<compile_context>
chip_gen: v5e
topology: v5e:2x2
jax: 0.10.0
libtpu: 0.0.40
codegen_flags: <defaults>
</compile_context>

<pallas_src>
import numpy as np
import jax
import jax.numpy as jnp
from jax.experimental import pallas as pl
from jax.experimental.pallas import tpu as pltpu

# small, deterministic hyper-parameters consistent with the module
NUM_ELEMENTS = 8        # num_elements (feature "sequence" length)
HIDDEN = 32             # hidden_dim
NUM_HEADS = 4
NUM_LAYERS = 3
HEAD_DIM = HIDDEN // NUM_HEADS
LN_EPS = 1e-5           # nn.LayerNorm default eps


def gflownet_kernel(x_ref, emb_w_ref, bias0_ref,
                    inwT_ref, inb_ref, owT_ref, ob_ref, lnw_ref, lnb_ref,
                    hmask_ref, bmask_ref, segsum_ref, avg_ref,
                    fc1w_ref, fc1b_ref, fc2w_ref, fc2b_ref,
                    flows_ref, attn_ref):
    f32 = jnp.float32
    N, H, NH = NUM_ELEMENTS, HIDDEN, NUM_HEADS
    BN = x_ref.shape[0]
    B = BN // N

    # ---- feature embedding: Linear(1,H) on each 0/1 scalar + positional encoding ----
    # bias0 = tile(pos, B) + emb_b was folded on the host (loop/grid invariant).
    h = x_ref[...] * emb_w_ref[...] + bias0_ref[...]                  # (BN, H)

    bmask = bmask_ref[...]      # (BN, NH*BN)  additive validity mask (0 / -1e30)
    segsum = segsum_ref[...]    # (NH*BN, NH*BN) block-diag ones (per-head segments)
    avg_m = avg_ref[...]        # (NH*BN, BN)  head-averaging matrix

    for l in range(NUM_LAYERS):
        # fused q/k/v projection; 1/sqrt(head_dim) already folded into the q block.
        qkv = jnp.dot(h, inwT_ref[l], preferred_element_type=f32) + inb_ref[l]  # (BN, 3H)
        q = qkv[:, :H]
        k = qkv[:, H:2 * H]
        v = qkv[:, 2 * H:]

        # per-head key/value stacks: heads stacked along the SUBLANE axis, lanes stay
        # full-width (H); lane masks replace the narrow per-head lane slices.
        k_stack = jnp.concatenate([k * hmask_ref[hh] for hh in range(NH)], axis=0)  # (NH*BN, H)
        v_stack = jnp.concatenate([v * hmask_ref[hh] for hh in range(NH)], axis=0)  # (NH*BN, H)

        # all heads' scores in ONE lane-dense matmul: column h*BN + r2 holds
        # q_h[row] . k_h[r2]; cross-batch columns are disabled by the additive mask.
        s = jnp.einsum('rc,xc->rx', q, k_stack, preferred_element_type=f32)  # (BN, NH*BN)
        s = s + bmask

        # segmented softmax: a single whole-row max is a valid stabilizer (constant
        # within every 16-lane head segment); segment sums via block-diag-ones matmul.
        m = jnp.max(s, axis=-1, keepdims=True)                               # (BN, 1)
        e = jnp.exp(s - m)                                                   # (BN, NH*BN)
        denom = jnp.dot(e, segsum, preferred_element_type=f32)               # (BN, NH*BN)
        p = e / denom                                                        # exact divide

        # attention output for ALL heads in one matmul (v_stack lanes are pre-masked,
        # so each head's contribution lands only in its own lane block).
        o = jnp.dot(p, v_stack, preferred_element_type=f32)                  # (BN, H)
        # head-averaged attention weights (nn.MultiheadAttention default)
        attn_ref[l] = jnp.dot(p, avg_m, preferred_element_type=f32)          # (BN, BN)

        proj = jnp.dot(o, owT_ref[l], preferred_element_type=f32) + ob_ref[l]

        # dropout(0.1) is identity at inference; residual + LayerNorm (biased variance)
        y = h + proj
        mean = jnp.mean(y, axis=-1, keepdims=True)
        var = jnp.mean((y - mean) ** 2, axis=-1, keepdims=True)
        h = (y - mean) * jax.lax.rsqrt(var + LN_EPS) * lnw_ref[l] + lnb_ref[l]

    # ---- final head: Linear(N*H,H) -> ReLU -> [Dropout: identity] -> Linear(H,1) -> Softplus
    # fc1 as an accumulation over the N feature positions (MXU, no lane re-layout).
    h3 = h.reshape(B, N, H)
    acc = jnp.zeros((B, H), f32)
    for n in range(N):
        acc = acc + jnp.dot(h3[:, n, :], fc1w_ref[n], preferred_element_type=f32)
    hidden = jnp.maximum(acc + fc1b_ref[...], 0.0)                            # (B, H)
    logits = jnp.sum(hidden * fc2w_ref[...], axis=-1, keepdims=True) + fc2b_ref[...]  # (B, 1)
    # Softplus with PyTorch's threshold=20 behaviour
    flows_ref[...] = jnp.where(logits > 20.0, logits,
                               jnp.log1p(jnp.exp(jnp.minimum(logits, 20.0))))


def _full_spec(shape):
    nd = len(shape)
    return pl.BlockSpec(shape, lambda i, _nd=nd: (0,) * _nd)


def improved_gflownet_forward(x, params):
    """x: (B, num_elements) float 0/1, exactly like the PyTorch module's forward."""
    if x.ndim == 1:
        x = x[None, :]
    B = x.shape[0]
    N, H, L, NH = NUM_ELEMENTS, HIDDEN, NUM_LAYERS, NUM_HEADS
    BN = B * N
    x2 = x.astype(jnp.float32).reshape(BN, 1)

    # ---- host-side folding (perf review items 1 & 2) ----
    scale = 1.0 / float(np.sqrt(HEAD_DIM))
    scale_vec = jnp.concatenate(
        [jnp.full((H,), scale, jnp.float32), jnp.ones((2 * H,), jnp.float32)])
    inwT = jnp.transpose(params['in_w'], (0, 2, 1)) * scale_vec              # (L, H, 3H)
    inb = params['in_b'].reshape(L, 1, 3 * H) * scale_vec                    # (L, 1, 3H)
    bias0 = jnp.tile(params['pos'], (B, 1)) + params['emb_b']                # (BN, H)

    # ---- tiny host-built constants that keep the attention lane-dense ----
    hmask = np.zeros((NH, 1, H), np.float32)            # per-head lane masks
    for hh in range(NH):
        hmask[hh, 0, hh * HEAD_DIM:(hh + 1) * HEAD_DIM] = 1.0
    bmask = np.full((BN, NH * BN), -1e30, np.float32)   # same-batch validity mask
    for b in range(B):
        for hh in range(NH):
            bmask[b * N:(b + 1) * N, hh * BN + b * N: hh * BN + (b + 1) * N] = 0.0
    segsum = np.kron(np.eye(NH, dtype=np.float32),
                     np.ones((BN, BN), np.float32))     # (NH*BN, NH*BN)
    avg_m = np.tile(np.eye(BN, dtype=np.float32), (NH, 1)) / NH   # (NH*BN, BN)

    inputs = (
        x2,                                               # (BN, 1)
        params['emb_w'],                                  # (1, H)
        bias0,                                            # (BN, H)
        inwT,                                             # (L, H, 3H) q-scaled
        inb,                                              # (L, 1, 3H) q-scaled
        jnp.transpose(params['out_w'], (0, 2, 1)),        # (L, H, H)
        params['out_b'].reshape(L, 1, H),                 # (L, 1, H)
        params['ln_w'].reshape(L, 1, H),                  # (L, 1, H)
        params['ln_b'].reshape(L, 1, H),                  # (L, 1, H)
        jnp.asarray(hmask),                               # (NH, 1, H)
        jnp.asarray(bmask),                               # (BN, NH*BN)
        jnp.asarray(segsum),                              # (NH*BN, NH*BN)
        jnp.asarray(avg_m),                               # (NH*BN, BN)
        jnp.transpose(params['fc1_w'], (1, 2, 0)),        # (N, H, H)
        params['fc1_b'],                                  # (1, H)
        params['fc2_w'],                                  # (1, H)
        params['fc2_b'],                                  # (1, 1)
    )

    out_shape = (jax.ShapeDtypeStruct((B, 1), jnp.float32),
                 jax.ShapeDtypeStruct((L, BN, BN), jnp.float32))

    flows, attn = pl.pallas_call(
        gflownet_kernel,
        out_shape=out_shape,
        grid=(1,),
        in_specs=[_full_spec(a.shape) for a in inputs],
        out_specs=(_full_spec((B, 1)), _full_spec((L, BN, BN))),
        compiler_params=pltpu.CompilerParams(dimension_semantics=("arbitrary",)),
    )(*inputs)

    # wrapper-side extraction of the per-batch diagonal blocks of the head-averaged
    # (BN, BN) attention (cross-batch entries are exactly the masked ~0 columns).
    attention_weights = [
        jnp.stack([attn[l, b * N:(b + 1) * N, b * N:(b + 1) * N] for b in range(B)],
                  axis=0)
        for l in range(L)
    ]
    return flows, attention_weights


def init_params(key):
    """Deterministic synthetic parameters matching the module's shapes (PyTorch layouts)."""
    H, N, L = HIDDEN, NUM_ELEMENTS, NUM_LAYERS
    ks = jax.random.split(key, 13)
    r = lambda k, shape, s=0.1: (s * jax.random.normal(k, shape)).astype(jnp.float32)
    return {
        'emb_w': r(ks[0], (1, H)),          # Linear(1, H).weight (H,1) stored as (1,H)
        'emb_b': r(ks[1], (1, H)),
        'pos':   r(ks[2], (N, H)),          # nn.Parameter(randn(N, H))
        'in_w':  r(ks[3], (L, 3 * H, H)),   # MHA in_proj_weight per layer
        'in_b':  r(ks[4], (L, 3 * H)),
        'out_w': r(ks[5], (L, H, H)),       # MHA out_proj.weight per layer
        'out_b': r(ks[6], (L, H)),
        'ln_w':  (1.0 + r(ks[7], (L, H))).astype(jnp.float32),
        'ln_b':  r(ks[8], (L, H)),
        'fc1_w': r(ks[9], (H, N, H)),       # Linear(N*H, H).weight reshaped to (H, N, H)
        'fc1_b': r(ks[10], (1, H)),
        'fc2_w': r(ks[11], (1, H)),         # Linear(H, 1).weight
        'fc2_b': r(ks[12], (1, 1)),
    }


def reference_forward(x, p):
    """Pure-JAX reference mirroring the PyTorch forward (eval mode)."""
    B = x.shape[0]
    H, N = HIDDEN, NUM_ELEMENTS
    x = x.astype(jnp.float32)
    h = x[:, :, None] * p['emb_w'][0] + p['emb_b'][0]
    h = h + p['pos'][None]
    scale = 1.0 / float(np.sqrt(HEAD_DIM))
    attn_list = []
    for l in range(NUM_LAYERS):
        w_in, b_in = p['in_w'][l], p['in_b'][l]
        q = h @ w_in[:H].T + b_in[:H]
        k = h @ w_in[H:2 * H].T + b_in[H:2 * H]
        v = h @ w_in[2 * H:].T + b_in[2 * H:]
        qh = q.reshape(B, N, NUM_HEADS, HEAD_DIM)
        kh = k.reshape(B, N, NUM_HEADS, HEAD_DIM)
        vh = v.reshape(B, N, NUM_HEADS, HEAD_DIM)
        s = jnp.einsum('bqhd,bkhd->bhqk', qh, kh) * scale
        pw = jax.nn.softmax(s, axis=-1)
        o = jnp.einsum('bhqk,bkhd->bqhd', pw, vh).reshape(B, N, H)
        proj = o @ p['out_w'][l].T + p['out_b'][l]
        attn_list.append(pw.mean(axis=1))
        y = h + proj
        mean = y.mean(-1, keepdims=True)
        var = ((y - mean) ** 2).mean(-1, keepdims=True)
        h = (y - mean) / jnp.sqrt(var + LN_EPS) * p['ln_w'][l] + p['ln_b'][l]
    flat = h.reshape(B, N * H)
    w1 = p['fc1_w'].reshape(H, N * H)
    hid = jnp.maximum(flat @ w1.T + p['fc1_b'][0], 0.0)
    logits = hid @ p['fc2_w'][0][:, None] + p['fc2_b'][0]
    return jax.nn.softplus(logits), attn_list


if __name__ == "__main__":
    key = jax.random.PRNGKey(0)
    pkey, xkey = jax.random.split(key)
    params = init_params(pkey)

    B = 2
    # binary feature-selection states, as the module expects
    x = (jax.random.uniform(xkey, (B, NUM_ELEMENTS)) < 0.5).astype(jnp.float32)

    flows, attn_weights = improved_gflownet_forward(x, params)
    flows = jax.block_until_ready(flows)
    attn_weights = [jax.block_until_ready(a) for a in attn_weights]

    ref_flows, ref_attn = reference_forward(x, params)
    np.testing.assert_allclose(np.asarray(flows), np.asarray(ref_flows),
                               rtol=2e-3, atol=2e-3)
    for a, r in zip(attn_weights, ref_attn):
        np.testing.assert_allclose(np.asarray(a), np.asarray(r), rtol=2e-3, atol=2e-3)

    print("KERNEL_OK")
</pallas_src>

<mosaic_0001>
module attributes {stable_mosaic.version = 11 : i64} {
  func.func @gflownet_kernel(%arg0: i32, %arg1: memref<16x1xf32, #tpu.memory_space<vmem>>, %arg2: memref<1x32xf32, #tpu.memory_space<vmem>>, %arg3: memref<16x32xf32, #tpu.memory_space<vmem>>, %arg4: memref<3x32x96xf32, #tpu.memory_space<vmem>>, %arg5: memref<3x1x96xf32, #tpu.memory_space<vmem>>, %arg6: memref<3x32x32xf32, #tpu.memory_space<vmem>>, %arg7: memref<3x1x32xf32, #tpu.memory_space<vmem>>, %arg8: memref<3x1x32xf32, #tpu.memory_space<vmem>>, %arg9: memref<3x1x32xf32, #tpu.memory_space<vmem>>, %arg10: memref<4x1x32xf32, #tpu.memory_space<vmem>>, %arg11: memref<16x64xf32, #tpu.memory_space<vmem>>, %arg12: memref<64x64xf32, #tpu.memory_space<vmem>>, %arg13: memref<64x16xf32, #tpu.memory_space<vmem>>, %arg14: memref<8x32x32xf32, #tpu.memory_space<vmem>>, %arg15: memref<1x32xf32, #tpu.memory_space<vmem>>, %arg16: memref<1x32xf32, #tpu.memory_space<vmem>>, %arg17: memref<1x1xf32, #tpu.memory_space<vmem>>, %arg18: memref<2x1xf32, #tpu.memory_space<vmem>>, %arg19: memref<3x16x16xf32, #tpu.memory_space<vmem>>) attributes {dimension_semantics = [#tpu.dimension_semantics<arbitrary>], iteration_bounds = array<i64: 1>, scalar_prefetch = 0 : i64, scratch_operands = 0 : i64, tpu.core_type = #tpu.core_type<tc>, window_params = [{pipeline_mode = #tpu.pipeline_mode<synchronous>, transform_indices = @transform_0, window_bounds = array<i64: 16, 1>}, {pipeline_mode = #tpu.pipeline_mode<synchronous>, transform_indices = @transform_1, window_bounds = array<i64: 1, 32>}, {pipeline_mode = #tpu.pipeline_mode<synchronous>, transform_indices = @transform_2, window_bounds = array<i64: 16, 32>}, {pipeline_mode = #tpu.pipeline_mode<synchronous>, transform_indices = @transform_3, window_bounds = array<i64: 3, 32, 96>}, {pipeline_mode = #tpu.pipeline_mode<synchronous>, transform_indices = @transform_4, window_bounds = array<i64: 3, 1, 96>}, {pipeline_mode = #tpu.pipeline_mode<synchronous>, transform_indices = @transform_5, window_bounds = array<i64: 3, 32, 32>}, {pipeline_mode = #tpu.pipeline_mode<synchronous>, transform_indices = @transform_6, window_bounds = array<i64: 3, 1, 32>}, {pipeline_mode = #tpu.pipeline_mode<synchronous>, transform_indices = @transform_7, window_bounds = array<i64: 3, 1, 32>}, {pipeline_mode = #tpu.pipeline_mode<synchronous>, transform_indices = @transform_8, window_bounds = array<i64: 3, 1, 32>}, {pipeline_mode = #tpu.pipeline_mode<synchronous>, transform_indices = @transform_9, window_bounds = array<i64: 4, 1, 32>}, {pipeline_mode = #tpu.pipeline_mode<synchronous>, transform_indices = @transform_10, window_bounds = array<i64: 16, 64>}, {pipeline_mode = #tpu.pipeline_mode<synchronous>, transform_indices = @transform_11, window_bounds = array<i64: 64, 64>}, {pipeline_mode = #tpu.pipeline_mode<synchronous>, transform_indices = @transform_12, window_bounds = array<i64: 64, 16>}, {pipeline_mode = #tpu.pipeline_mode<synchronous>, transform_indices = @transform_13, window_bounds = array<i64: 8, 32, 32>}, {pipeline_mode = #tpu.pipeline_mode<synchronous>, transform_indices = @transform_14, window_bounds = array<i64: 1, 32>}, {pipeline_mode = #tpu.pipeline_mode<synchronous>, transform_indices = @transform_15, window_bounds = array<i64: 1, 32>}, {pipeline_mode = #tpu.pipeline_mode<synchronous>, transform_indices = @transform_16, window_bounds = array<i64: 1, 1>}, {pipeline_mode = #tpu.pipeline_mode<synchronous>, transform_indices = @transform_17, window_bounds = array<i64: 2, 1>}, {pipeline_mode = #tpu.pipeline_mode<synchronous>, transform_indices = @transform_18, window_bounds = array<i64: 3, 16, 16>}]} {
    %c0 = arith.constant 0 : index
    %c0_0 = arith.constant 0 : index
    %0 = vector.load %arg1[%c0, %c0_0] : memref<16x1xf32, #tpu.memory_space<vmem>>, vector<16x1xf32>
    %c0_1 = arith.constant 0 : index
    %c0_2 = arith.constant 0 : index
    %1 = vector.load %arg2[%c0_1, %c0_2] : memref<1x32xf32, #tpu.memory_space<vmem>>, vector<1x32xf32>
    %2 = vector.broadcast %0 : vector<16x1xf32> to vector<16x32xf32>
    %3 = vector.broadcast %1 : vector<1x32xf32> to vector<16x32xf32>
    %4 = arith.mulf %2, %3 : vector<16x32xf32>
    %c0_3 = arith.constant 0 : index
    %c0_4 = arith.constant 0 : index
    %5 = vector.load %arg3[%c0_3, %c0_4] : memref<16x32xf32, #tpu.memory_space<vmem>>, vector<16x32xf32>
    %6 = arith.addf %4, %5 : vector<16x32xf32>
    %c0_5 = arith.constant 0 : index
    %c0_6 = arith.constant 0 : index
    %7 = vector.load %arg11[%c0_5, %c0_6] : memref<16x64xf32, #tpu.memory_space<vmem>>, vector<16x64xf32>
    %c0_7 = arith.constant 0 : index
    %c0_8 = arith.constant 0 : index
    %8 = vector.load %arg12[%c0_7, %c0_8] : memref<64x64xf32, #tpu.memory_space<vmem>>, vector<64x64xf32>
    %c0_9 = arith.constant 0 : index
    %c0_10 = arith.constant 0 : index
    %9 = vector.load %arg13[%c0_9, %c0_10] : memref<64x16xf32, #tpu.memory_space<vmem>>, vector<64x16xf32>
    %c0_11 = arith.constant 0 : index
    %c0_12 = arith.constant 0 : index
    %c0_13 = arith.constant 0 : index
    %10 = vector.load %arg4[%c0_11, %c0_12, %c0_13] : memref<3x32x96xf32, #tpu.memory_space<vmem>>, vector<1x32x96xf32>
    %11 = vector.shape_cast %10 : vector<1x32x96xf32> to vector<32x96xf32>
    %cst = arith.constant dense<0.000000e+00> : vector<16x96xf32>
    %12 = tpu.matmul %6, %11, %cst {dimension_numbers = #tpu.dot_dimension_numbers<[1], [0], [0], [1], [0, 0, 1, 1], [], []>} : vector<16x32xf32>, vector<32x96xf32>, vector<16x96xf32> -> vector<16x96xf32>
    %c0_14 = arith.constant 0 : index
    %c0_15 = arith.constant 0 : index
    %c0_16 = arith.constant 0 : index
    %13 = vector.load %arg5[%c0_14, %c0_15, %c0_16] : memref<3x1x96xf32, #tpu.memory_space<vmem>>, vector<1x1x96xf32>
    %14 = vector.shape_cast %13 : vector<1x1x96xf32> to vector<1x96xf32>
    %15 = vector.broadcast %14 : vector<1x96xf32> to vector<16x96xf32>
    %16 = arith.addf %12, %15 : vector<16x96xf32>
    %17 = vector.extract_strided_slice %16 {offsets = [0, 0], sizes = [16, 32], strides = [1, 1]} : vector<16x96xf32> to vector<16x32xf32>
    %18 = vector.extract_strided_slice %16 {offsets = [0, 32], sizes = [16, 32], strides = [1, 1]} : vector<16x96xf32> to vector<16x32xf32>
    %19 = vector.extract_strided_slice %16 {offsets = [0, 64], sizes = [16, 32], strides = [1, 1]} : vector<16x96xf32> to vector<16x32xf32>
    %c0_17 = arith.constant 0 : index
    %c0_18 = arith.constant 0 : index
    %c0_19 = arith.constant 0 : index
    %20 = vector.load %arg10[%c0_17, %c0_18, %c0_19] : memref<4x1x32xf32, #tpu.memory_space<vmem>>, vector<1x1x32xf32>
    %21 = vector.shape_cast %20 : vector<1x1x32xf32> to vector<1x32xf32>
    %22 = vector.broadcast %21 : vector<1x32xf32> to vector<16x32xf32>
    %23 = arith.mulf %18, %22 : vector<16x32xf32>
    %c1 = arith.constant 1 : index
    %c0_20 = arith.constant 0 : index
    %c0_21 = arith.constant 0 : index
    %24 = vector.load %arg10[%c1, %c0_20, %c0_21] : memref<4x1x32xf32, #tpu.memory_space<vmem>>, vector<1x1x32xf32>
    %25 = vector.shape_cast %24 : vector<1x1x32xf32> to vector<1x32xf32>
    %26 = vector.broadcast %25 : vector<1x32xf32> to vector<16x32xf32>
    %27 = arith.mulf %18, %26 : vector<16x32xf32>
    %c2 = arith.constant 2 : index
    %c0_22 = arith.constant 0 : index
    %c0_23 = arith.constant 0 : index
    %28 = vector.load %arg10[%c2, %c0_22, %c0_23] : memref<4x1x32xf32, #tpu.memory_space<vmem>>, vector<1x1x32xf32>
    %29 = vector.shape_cast %28 : vector<1x1x32xf32> to vector<1x32xf32>
    %30 = vector.broadcast %29 : vector<1x32xf32> to vector<16x32xf32>
    %31 = arith.mulf %18, %30 : vector<16x32xf32>
    %c3 = arith.constant 3 : index
    %c0_24 = arith.constant 0 : index
    %c0_25 = arith.constant 0 : index
    %32 = vector.load %arg10[%c3, %c0_24, %c0_25] : memref<4x1x32xf32, #tpu.memory_space<vmem>>, vector<1x1x32xf32>
    %33 = vector.shape_cast %32 : vector<1x1x32xf32> to vector<1x32xf32>
    %34 = vector.broadcast %33 : vector<1x32xf32> to vector<16x32xf32>
    %35 = arith.mulf %18, %34 : vector<16x32xf32>
    %36 = tpu.concatenate %23, %27, %31, %35 in 0 : vector<16x32xf32>, vector<16x32xf32>, vector<16x32xf32>, vector<16x32xf32> -> vector<64x32xf32>
    %c0_26 = arith.constant 0 : index
    %c0_27 = arith.constant 0 : index
    %c0_28 = arith.constant 0 : index
    %37 = vector.load %arg10[%c0_26, %c0_27, %c0_28] : memref<4x1x32xf32, #tpu.memory_space<vmem>>, vector<1x1x32xf32>
    %38 = vector.shape_cast %37 : vector<1x1x32xf32> to vector<1x32xf32>
    %39 = vector.broadcast %38 : vector<1x32xf32> to vector<16x32xf32>
    %40 = arith.mulf %19, %39 : vector<16x32xf32>
    %c1_29 = arith.constant 1 : index
    %c0_30 = arith.constant 0 : index
    %c0_31 = arith.constant 0 : index
    %41 = vector.load %arg10[%c1_29, %c0_30, %c0_31] : memref<4x1x32xf32, #tpu.memory_space<vmem>>, vector<1x1x32xf32>
    %42 = vector.shape_cast %41 : vector<1x1x32xf32> to vector<1x32xf32>
    %43 = vector.broadcast %42 : vector<1x32xf32> to vector<16x32xf32>
    %44 = arith.mulf %19, %43 : vector<16x32xf32>
    %c2_32 = arith.constant 2 : index
    %c0_33 = arith.constant 0 : index
    %c0_34 = arith.constant 0 : index
    %45 = vector.load %arg10[%c2_32, %c0_33, %c0_34] : memref<4x1x32xf32, #tpu.memory_space<vmem>>, vector<1x1x32xf32>
    %46 = vector.shape_cast %45 : vector<1x1x32xf32> to vector<1x32xf32>
    %47 = vector.broadcast %46 : vector<1x32xf32> to vector<16x32xf32>
    %48 = arith.mulf %19, %47 : vector<16x32xf32>
    %c3_35 = arith.constant 3 : index
    %c0_36 = arith.constant 0 : index
    %c0_37 = arith.constant 0 : index
    %49 = vector.load %arg10[%c3_35, %c0_36, %c0_37] : memref<4x1x32xf32, #tpu.memory_space<vmem>>, vector<1x1x32xf32>
    %50 = vector.shape_cast %49 : vector<1x1x32xf32> to vector<1x32xf32>
    %51 = vector.broadcast %50 : vector<1x32xf32> to vector<16x32xf32>
    %52 = arith.mulf %19, %51 : vector<16x32xf32>
    %53 = tpu.concatenate %40, %44, %48, %52 in 0 : vector<16x32xf32>, vector<16x32xf32>, vector<16x32xf32>, vector<16x32xf32> -> vector<64x32xf32>
    "tpu.trace_start"() <{level = 10 : i32, message = "rc,xc->rx"}> : () -> ()
    %cst_38 = arith.constant dense<0.000000e+00> : vector<16x64xf32>
    %54 = tpu.matmul %17, %36, %cst_38 {dimension_numbers = #tpu.dot_dimension_numbers<[1], [1], [0], [0], [0, 0, 1, 0], [], []>} : vector<16x32xf32>, vector<64x32xf32>, vector<16x64xf32> -> vector<16x64xf32>
    "tpu.trace_stop"() : () -> ()
    %55 = arith.addf %54, %7 : vector<16x64xf32>
    %cst_39 = arith.constant dense<0xFF800000> : vector<16xf32>
    %56 = vector.multi_reduction <maximumf>, %55, %cst_39 [1] : vector<16x64xf32> to vector<16xf32>
    %57 = vector.shape_cast %56 : vector<16xf32> to vector<16x1xf32>
    %58 = vector.broadcast %57 : vector<16x1xf32> to vector<16x64xf32>
    %59 = arith.subf %55, %58 : vector<16x64xf32>
    %60 = math.exp %59 : vector<16x64xf32>
    %cst_40 = arith.constant dense<0.000000e+00> : vector<16x64xf32>
    %61 = tpu.matmul %60, %8, %cst_40 {dimension_numbers = #tpu.dot_dimension_numbers<[1], [0], [0], [1], [0, 0, 1, 1], [], []>} : vector<16x64xf32>, vector<64x64xf32>, vector<16x64xf32> -> vector<16x64xf32>
    %62 = arith.divf %60, %61 : vector<16x64xf32>
    %cst_41 = arith.constant dense<0.000000e+00> : vector<16x32xf32>
    %63 = tpu.matmul %62, %53, %cst_41 {dimension_numbers = #tpu.dot_dimension_numbers<[1], [0], [0], [1], [0, 0, 1, 1], [], []>} : vector<16x64xf32>, vector<64x32xf32>, vector<16x32xf32> -> vector<16x32xf32>
    %cst_42 = arith.constant dense<0.000000e+00> : vector<16x16xf32>
    %64 = tpu.matmul %62, %9, %cst_42 {dimension_numbers = #tpu.dot_dimension_numbers<[1], [0], [0], [1], [0, 0, 1, 1], [], []>} : vector<16x64xf32>, vector<64x16xf32>, vector<16x16xf32> -> vector<16x16xf32>
    %c0_43 = arith.constant 0 : index
    %c0_44 = arith.constant 0 : index
    %c0_45 = arith.constant 0 : index
    %65 = vector.load %arg19[%c0_43, %c0_44, %c0_45] : memref<3x16x16xf32, #tpu.memory_space<vmem>>, vector<1x16x16xf32>
    %66 = vector.shape_cast %65 : vector<1x16x16xf32> to vector<16x16xf32>
    %67 = vector.shape_cast %64 : vector<16x16xf32> to vector<1x16x16xf32>
    tpu.vector_store %arg19[%c0_43, %c0_44, %c0_45], %67 {strides = array<i32>} : memref<3x16x16xf32, #tpu.memory_space<vmem>>, vector<1x16x16xf32>,
    %c0_46 = arith.constant 0 : index
    %c0_47 = arith.constant 0 : index
    %c0_48 = arith.constant 0 : index
    %68 = vector.load %arg6[%c0_46, %c0_47, %c0_48] : memref<3x32x32xf32, #tpu.memory_space<vmem>>, vector<1x32x32xf32>
    %69 = vector.shape_cast %68 : vector<1x32x32xf32> to vector<32x32xf32>
    %cst_49 = arith.constant dense<0.000000e+00> : vector<16x32xf32>
    %70 = tpu.matmul %63, %69, %cst_49 {dimension_numbers = #tpu.dot_dimension_numbers<[1], [0], [0], [1], [0, 0, 1, 1], [], []>} : vector<16x32xf32>, vector<32x32xf32>, vector<16x32xf32> -> vector<16x32xf32>
    %c0_50 = arith.constant 0 : index
    %c0_51 = arith.constant 0 : index
    %c0_52 = arith.constant 0 : index
    %71 = vector.load %arg7[%c0_50, %c0_51, %c0_52] : memref<3x1x32xf32, #tpu.memory_space<vmem>>, vector<1x1x32xf32>
    %72 = vector.shape_cast %71 : vector<1x1x32xf32> to vector<1x32xf32>
    %73 = vector.broadcast %72 : vector<1x32xf32> to vector<16x32xf32>
    %74 = arith.addf %70, %73 : vector<16x32xf32>
    %75 = arith.addf %6, %74 : vector<16x32xf32>
    %cst_53 = arith.constant dense<0.000000e+00> : vector<16xf32>
    %76 = vector.multi_reduction <add>, %75, %cst_53 [1] : vector<16x32xf32> to vector<16xf32>
    %77 = vector.shape_cast %76 : vector<16xf32> to vector<16x1xf32>
    %cst_54 = arith.constant 3.200000e+01 : f32
    %78 = vector.broadcast %cst_54 : f32 to vector<16x1xf32>
    %79 = arith.divf %77, %78 : vector<16x1xf32>
    %80 = vector.broadcast %79 : vector<16x1xf32> to vector<16x32xf32>
    %81 = arith.subf %75, %80 : vector<16x32xf32>
    %82 = arith.mulf %81, %81 : vector<16x32xf32>
    %cst_55 = arith.constant dense<0.000000e+00> : vector<16xf32>
    %83 = vector.multi_reduction <add>, %82, %cst_55 [1] : vector<16x32xf32> to vector<16xf32>
    %84 = vector.shape_cast %83 : vector<16xf32> to vector<16x1xf32>
    %cst_56 = arith.constant 3.200000e+01 : f32
    %85 = vector.broadcast %cst_56 : f32 to vector<16x1xf32>
    %86 = arith.divf %84, %85 : vector<16x1xf32>
    %87 = vector.broadcast %79 : vector<16x1xf32> to vector<16x32xf32>
    %88 = arith.subf %75, %87 : vector<16x32xf32>
    %cst_57 = arith.constant 9.99999974E-6 : f32
    %89 = vector.broadcast %cst_57 : f32 to vector<16x1xf32>
    %90 = arith.addf %86, %89 : vector<16x1xf32>
    %91 = math.rsqrt %90 : vector<16x1xf32>
    %92 = vector.broadcast %91 : vector<16x1xf32> to vector<16x32xf32>
    %93 = arith.mulf %88, %92 : vector<16x32xf32>
    %c0_58 = arith.constant 0 : index
    %c0_59 = arith.constant 0 : index
    %c0_60 = arith.constant 0 : index
    %94 = vector.load %arg8[%c0_58, %c0_59, %c0_60] : memref<3x1x32xf32, #tpu.memory_space<vmem>>, vector<1x1x32xf32>
    %95 = vector.shape_cast %94 : vector<1x1x32xf32> to vector<1x32xf32>
    %96 = vector.broadcast %95 : vector<1x32xf32> to vector<16x32xf32>
    %97 = arith.mulf %93, %96 : vector<16x32xf32>
    %c0_61 = arith.constant 0 : index
    %c0_62 = arith.constant 0 : index
    %c0_63 = arith.constant 0 : index
    %98 = vector.load %arg9[%c0_61, %c0_62, %c0_63] : memref<3x1x32xf32, #tpu.memory_space<vmem>>, vector<1x1x32xf32>
    %99 = vector.shape_cast %98 : vector<1x1x32xf32> to vector<1x32xf32>
    %100 = vector.broadcast %99 : vector<1x32xf32> to vector<16x32xf32>
    %101 = arith.addf %97, %100 : vector<16x32xf32>
    %c1_64 = arith.constant 1 : index
    %c0_65 = arith.constant 0 : index
    %c0_66 = arith.constant 0 : index
    %102 = vector.load %arg4[%c1_64, %c0_65, %c0_66] : memref<3x32x96xf32, #tpu.memory_space<vmem>>, vector<1x32x96xf32>
    %103 = vector.shape_cast %102 : vector<1x32x96xf32> to vector<32x96xf32>
    %cst_67 = arith.constant dense<0.000000e+00> : vector<16x96xf32>
    %104 = tpu.matmul %101, %103, %cst_67 {dimension_numbers = #tpu.dot_dimension_numbers<[1], [0], [0], [1], [0, 0, 1, 1], [], []>} : vector<16x32xf32>, vector<32x96xf32>, vector<16x96xf32> -> vector<16x96xf32>
    %c1_68 = arith.constant 1 : index
    %c0_69 = arith.constant 0 : index
    %c0_70 = arith.constant 0 : index
    %105 = vector.load %arg5[%c1_68, %c0_69, %c0_70] : memref<3x1x96xf32, #tpu.memory_space<vmem>>, vector<1x1x96xf32>
    %106 = vector.shape_cast %105 : vector<1x1x96xf32> to vector<1x96xf32>
    %107 = vector.broadcast %106 : vector<1x96xf32> to vector<16x96xf32>
    %108 = arith.addf %104, %107 : vector<16x96xf32>
    %109 = vector.extract_strided_slice %108 {offsets = [0, 0], sizes = [16, 32], strides = [1, 1]} : vector<16x96xf32> to vector<16x32xf32>
    %110 = vector.extract_strided_slice %108 {offsets = [0, 32], sizes = [16, 32], strides = [1, 1]} : vector<16x96xf32> to vector<16x32xf32>
    %111 = vector.extract_strided_slice %108 {offsets = [0, 64], sizes = [16, 32], strides = [1, 1]} : vector<16x96xf32> to vector<16x32xf32>
    %c0_71 = arith.constant 0 : index
    %c0_72 = arith.constant 0 : index
    %c0_73 = arith.constant 0 : index
    %112 = vector.load %arg10[%c0_71, %c0_72, %c0_73] : memref<4x1x32xf32, #tpu.memory_space<vmem>>, vector<1x1x32xf32>
    %113 = vector.shape_cast %112 : vector<1x1x32xf32> to vector<1x32xf32>
    %114 = vector.broadcast %113 : vector<1x32xf32> to vector<16x32xf32>
    %115 = arith.mulf %110, %114 : vector<16x32xf32>
    %c1_74 = arith.constant 1 : index
    %c0_75 = arith.constant 0 : index
    %c0_76 = arith.constant 0 : index
    %116 = vector.load %arg10[%c1_74, %c0_75, %c0_76] : memref<4x1x32xf32, #tpu.memory_space<vmem>>, vector<1x1x32xf32>
    %117 = vector.shape_cast %116 : vector<1x1x32xf32> to vector<1x32xf32>
    %118 = vector.broadcast %117 : vector<1x32xf32> to vector<16x32xf32>
    %119 = arith.mulf %110, %118 : vector<16x32xf32>
    %c2_77 = arith.constant 2 : index
    %c0_78 = arith.constant 0 : index
    %c0_79 = arith.constant 0 : index
    %120 = vector.load %arg10[%c2_77, %c0_78, %c0_79] : memref<4x1x32xf32, #tpu.memory_space<vmem>>, vector<1x1x32xf32>
    %121 = vector.shape_cast %120 : vector<1x1x32xf32> to vector<1x32xf32>
    %122 = vector.broadcast %121 : vector<1x32xf32> to vector<16x32xf32>
    %123 = arith.mulf %110, %122 : vector<16x32xf32>
    %c3_80 = arith.constant 3 : index
    %c0_81 = arith.constant 0 : index
    %c0_82 = arith.constant 0 : index
    %124 = vector.load %arg10[%c3_80, %c0_81, %c0_82] : memref<4x1x32xf32, #tpu.memory_space<vmem>>, vector<1x1x32xf32>
    %125 = vector.shape_cast %124 : vector<1x1x32xf32> to vector<1x32xf32>
    %126 = vector.broadcast %125 : vector<1x32xf32> to vector<16x32xf32>
    %127 = arith.mulf %110, %126 : vector<16x32xf32>
    %128 = tpu.concatenate %115, %119, %123, %127 in 0 : vector<16x32xf32>, vector<16x32xf32>, vector<16x32xf32>, vector<16x32xf32> -> vector<64x32xf32>
    %c0_83 = arith.constant 0 : index
    %c0_84 = arith.constant 0 : index
    %c0_85 = arith.constant 0 : index
    %129 = vector.load %arg10[%c0_83, %c0_84, %c0_85] : memref<4x1x32xf32, #tpu.memory_space<vmem>>, vector<1x1x32xf32>
    %130 = vector.shape_cast %129 : vector<1x1x32xf32> to vector<1x32xf32>
    %131 = vector.broadcast %130 : vector<1x32xf32> to vector<16x32xf32>
    %132 = arith.mulf %111, %131 : vector<16x32xf32>
    %c1_86 = arith.constant 1 : index
    %c0_87 = arith.constant 0 : index
    %c0_88 = arith.constant 0 : index
    %133 = vector.load %arg10[%c1_86, %c0_87, %c0_88] : memref<4x1x32xf32, #tpu.memory_space<vmem>>, vector<1x1x32xf32>
    %134 = vector.shape_cast %133 : vector<1x1x32xf32> to vector<1x32xf32>
    %135 = vector.broadcast %134 : vector<1x32xf32> to vector<16x32xf32>
    %136 = arith.mulf %111, %135 : vector<16x32xf32>
    %c2_89 = arith.constant 2 : index
    %c0_90 = arith.constant 0 : index
    %c0_91 = arith.constant 0 : index
    %137 = vector.load %arg10[%c2_89, %c0_90, %c0_91] : memref<4x1x32xf32, #tpu.memory_space<vmem>>, vector<1x1x32xf32>
    %138 = vector.shape_cast %137 : vector<1x1x32xf32> to vector<1x32xf32>
    %139 = vector.broadcast %138 : vector<1x32xf32> to vector<16x32xf32>
    %140 = arith.mulf %111, %139 : vector<16x32xf32>
    %c3_92 = arith.constant 3 : index
    %c0_93 = arith.constant 0 : index
    %c0_94 = arith.constant 0 : index
    %141 = vector.load %arg10[%c3_92, %c0_93, %c0_94] : memref<4x1x32xf32, #tpu.memory_space<vmem>>, vector<1x1x32xf32>
    %142 = vector.shape_cast %141 : vector<1x1x32xf32> to vector<1x32xf32>
    %143 = vector.broadcast %142 : vector<1x32xf32> to vector<16x32xf32>
    %144 = arith.mulf %111, %143 : vector<16x32xf32>
    %145 = tpu.concatenate %132, %136, %140, %144 in 0 : vector<16x32xf32>, vector<16x32xf32>, vector<16x32xf32>, vector<16x32xf32> -> vector<64x32xf32>
    "tpu.trace_start"() <{level = 10 : i32, message = "rc,xc->rx"}> : () -> ()
    %cst_95 = arith.constant dense<0.000000e+00> : vector<16x64xf32>
    %146 = tpu.matmul %109, %128, %cst_95 {dimension_numbers = #tpu.dot_dimension_numbers<[1], [1], [0], [0], [0, 0, 1, 0], [], []>} : vector<16x32xf32>, vector<64x32xf32>, vector<16x64xf32> -> vector<16x64xf32>
    "tpu.trace_stop"() : () -> ()
    %147 = arith.addf %146, %7 : vector<16x64xf32>
    %cst_96 = arith.constant dense<0xFF800000> : vector<16xf32>
    %148 = vector.multi_reduction <maximumf>, %147, %cst_96 [1] : vector<16x64xf32> to vector<16xf32>
    %149 = vector.shape_cast %148 : vector<16xf32> to vector<16x1xf32>
    %150 = vector.broadcast %149 : vector<16x1xf32> to vector<16x64xf32>
    %151 = arith.subf %147, %150 : vector<16x64xf32>
    %152 = math.exp %151 : vector<16x64xf32>
    %cst_97 = arith.constant dense<0.000000e+00> : vector<16x64xf32>
    %153 = tpu.matmul %152, %8, %cst_97 {dimension_numbers = #tpu.dot_dimension_numbers<[1], [0], [0], [1], [0, 0, 1, 1], [], []>} : vector<16x64xf32>, vector<64x64xf32>, vector<16x64xf32> -> vector<16x64xf32>
    %154 = arith.divf %152, %153 : vector<16x64xf32>
    %cst_98 = arith.constant dense<0.000000e+00> : vector<16x32xf32>
    %155 = tpu.matmul %154, %145, %cst_98 {dimension_numbers = #tpu.dot_dimension_numbers<[1], [0], [0], [1], [0, 0, 1, 1], [], []>} : vector<16x64xf32>, vector<64x32xf32>, vector<16x32xf32> -> vector<16x32xf32>
    %cst_99 = arith.constant dense<0.000000e+00> : vector<16x16xf32>
    %156 = tpu.matmul %154, %9, %cst_99 {dimension_numbers = #tpu.dot_dimension_numbers<[1], [0], [0], [1], [0, 0, 1, 1], [], []>} : vector<16x64xf32>, vector<64x16xf32>, vector<16x16xf32> -> vector<16x16xf32>
    %c1_100 = arith.constant 1 : index
    %c0_101 = arith.constant 0 : index
    %c0_102 = arith.constant 0 : index
    %157 = vector.load %arg19[%c1_100, %c0_101, %c0_102] : memref<3x16x16xf32, #tpu.memory_space<vmem>>, vector<1x16x16xf32>
    %158 = vector.shape_cast %157 : vector<1x16x16xf32> to vector<16x16xf32>
    %159 = vector.shape_cast %156 : vector<16x16xf32> to vector<1x16x16xf32>
    tpu.vector_store %arg19[%c1_100, %c0_101, %c0_102], %159 {strides = array<i32>} : memref<3x16x16xf32, #tpu.memory_space<vmem>>, vector<1x16x16xf32>,
    %c1_103 = arith.constant 1 : index
    %c0_104 = arith.constant 0 : index
    %c0_105 = arith.constant 0 : index
    %160 = vector.load %arg6[%c1_103, %c0_104, %c0_105] : memref<3x32x32xf32, #tpu.memory_space<vmem>>, vector<1x32x32xf32>
    %161 = vector.shape_cast %160 : vector<1x32x32xf32> to vector<32x32xf32>
    %cst_106 = arith.constant dense<0.000000e+00> : vector<16x32xf32>
    %162 = tpu.matmul %155, %161, %cst_106 {dimension_numbers = #tpu.dot_dimension_numbers<[1], [0], [0], [1], [0, 0, 1, 1], [], []>} : vector<16x32xf32>, vector<32x32xf32>, vector<16x32xf32> -> vector<16x32xf32>
    %c1_107 = arith.constant 1 : index
    %c0_108 = arith.constant 0 : index
    %c0_109 = arith.constant 0 : index
    %163 = vector.load %arg7[%c1_107, %c0_108, %c0_109] : memref<3x1x32xf32, #tpu.memory_space<vmem>>, vector<1x1x32xf32>
    %164 = vector.shape_cast %163 : vector<1x1x32xf32> to vector<1x32xf32>
    %165 = vector.broadcast %164 : vector<1x32xf32> to vector<16x32xf32>
    %166 = arith.addf %162, %165 : vector<16x32xf32>
    %167 = arith.addf %101, %166 : vector<16x32xf32>
    %cst_110 = arith.constant dense<0.000000e+00> : vector<16xf32>
    %168 = vector.multi_reduction <add>, %167, %cst_110 [1] : vector<16x32xf32> to vector<16xf32>
    %169 = vector.shape_cast %168 : vector<16xf32> to vector<16x1xf32>
    %cst_111 = arith.constant 3.200000e+01 : f32
    %170 = vector.broadcast %cst_111 : f32 to vector<16x1xf32>
    %171 = arith.divf %169, %170 : vector<16x1xf32>
    %172 = vector.broadcast %171 : vector<16x1xf32> to vector<16x32xf32>
    %173 = arith.subf %167, %172 : vector<16x32xf32>
    %174 = arith.mulf %173, %173 : vector<16x32xf32>
    %cst_112 = arith.constant dense<0.000000e+00> : vector<16xf32>
    %175 = vector.multi_reduction <add>, %174, %cst_112 [1] : vector<16x32xf32> to vector<16xf32>
    %176 = vector.shape_cast %175 : vector<16xf32> to vector<16x1xf32>
    %cst_113 = arith.constant 3.200000e+01 : f32
    %177 = vector.broadcast %cst_113 : f32 to vector<16x1xf32>
    %178 = arith.divf %176, %177 : vector<16x1xf32>
    %179 = vector.broadcast %171 : vector<16x1xf32> to vector<16x32xf32>
    %180 = arith.subf %167, %179 : vector<16x32xf32>
    %cst_114 = arith.constant 9.99999974E-6 : f32
    %181 = vector.broadcast %cst_114 : f32 to vector<16x1xf32>
    %182 = arith.addf %178, %181 : vector<16x1xf32>
    %183 = math.rsqrt %182 : vector<16x1xf32>
    %184 = vector.broadcast %183 : vector<16x1xf32> to vector<16x32xf32>
    %185 = arith.mulf %180, %184 : vector<16x32xf32>
    %c1_115 = arith.constant 1 : index
    %c0_116 = arith.constant 0 : index
    %c0_117 = arith.constant 0 : index
    %186 = vector.load %arg8[%c1_115, %c0_116, %c0_117] : memref<3x1x32xf32, #tpu.memory_space<vmem>>, vector<1x1x32xf32>
    %187 = vector.shape_cast %186 : vector<1x1x32xf32> to vector<1x32xf32>
    %188 = vector.broadcast %187 : vector<1x32xf32> to vector<16x32xf32>
    %189 = arith.mulf %185, %188 : vector<16x32xf32>
    %c1_118 = arith.constant 1 : index
    %c0_119 = arith.constant 0 : index
    %c0_120 = arith.constant 0 : index
    %190 = vector.load %arg9[%c1_118, %c0_119, %c0_120] : memref<3x1x32xf32, #tpu.memory_space<vmem>>, vector<1x1x32xf32>
    %191 = vector.shape_cast %190 : vector<1x1x32xf32> to vector<1x32xf32>
    %192 = vector.broadcast %191 : vector<1x32xf32> to vector<16x32xf32>
    %193 = arith.addf %189, %192 : vector<16x32xf32>
    %c2_121 = arith.constant 2 : index
    %c0_122 = arith.constant 0 : index
    %c0_123 = arith.constant 0 : index
    %194 = vector.load %arg4[%c2_121, %c0_122, %c0_123] : memref<3x32x96xf32, #tpu.memory_space<vmem>>, vector<1x32x96xf32>
    %195 = vector.shape_cast %194 : vector<1x32x96xf32> to vector<32x96xf32>
    %cst_124 = arith.constant dense<0.000000e+00> : vector<16x96xf32>
    %196 = tpu.matmul %193, %195, %cst_124 {dimension_numbers = #tpu.dot_dimension_numbers<[1], [0], [0], [1], [0, 0, 1, 1], [], []>} : vector<16x32xf32>, vector<32x96xf32>, vector<16x96xf32> -> vector<16x96xf32>
    %c2_125 = arith.constant 2 : index
    %c0_126 = arith.constant 0 : index
    %c0_127 = arith.constant 0 : index
    %197 = vector.load %arg5[%c2_125, %c0_126, %c0_127] : memref<3x1x96xf32, #tpu.memory_space<vmem>>, vector<1x1x96xf32>
    %198 = vector.shape_cast %197 : vector<1x1x96xf32> to vector<1x96xf32>
    %199 = vector.broadcast %198 : vector<1x96xf32> to vector<16x96xf32>
    %200 = arith.addf %196, %199 : vector<16x96xf32>
    %201 = vector.extract_strided_slice %200 {offsets = [0, 0], sizes = [16, 32], strides = [1, 1]} : vector<16x96xf32> to vector<16x32xf32>
    %202 = vector.extract_strided_slice %200 {offsets = [0, 32], sizes = [16, 32], strides = [1, 1]} : vector<16x96xf32> to vector<16x32xf32>
    %203 = vector.extract_strided_slice %200 {offsets = [0, 64], sizes = [16, 32], strides = [1, 1]} : vector<16x96xf32> to vector<16x32xf32>
    %c0_128 = arith.constant 0 : index
    %c0_129 = arith.constant 0 : index
    %c0_130 = arith.constant 0 : index
    %204 = vector.load %arg10[%c0_128, %c0_129, %c0_130] : memref<4x1x32xf32, #tpu.memory_space<vmem>>, vector<1x1x32xf32>
    %205 = vector.shape_cast %204 : vector<1x1x32xf32> to vector<1x32xf32>
    %206 = vector.broadcast %205 : vector<1x32xf32> to vector<16x32xf32>
    %207 = arith.mulf %202, %206 : vector<16x32xf32>
    %c1_131 = arith.constant 1 : index
    %c0_132 = arith.constant 0 : index
    %c0_133 = arith.constant 0 : index
    %208 = vector.load %arg10[%c1_131, %c0_132, %c0_133] : memref<4x1x32xf32, #tpu.memory_space<vmem>>, vector<1x1x32xf32>
    %209 = vector.shape_cast %208 : vector<1x1x32xf32> to vector<1x32xf32>
    %210 = vector.broadcast %209 : vector<1x32xf32> to vector<16x32xf32>
    %211 = arith.mulf %202, %210 : vector<16x32xf32>
    %c2_134 = arith.constant 2 : index
    %c0_135 = arith.constant 0 : index
    %c0_136 = arith.constant 0 : index
    %212 = vector.load %arg10[%c2_134, %c0_135, %c0_136] : memref<4x1x32xf32, #tpu.memory_space<vmem>>, vector<1x1x32xf32>
    %213 = vector.shape_cast %212 : vector<1x1x32xf32> to vector<1x32xf32>
    %214 = vector.broadcast %213 : vector<1x32xf32> to vector<16x32xf32>
    %215 = arith.mulf %202, %214 : vector<16x32xf32>
    %c3_137 = arith.constant 3 : index
    %c0_138 = arith.constant 0 : index
    %c0_139 = arith.constant 0 : index
    %216 = vector.load %arg10[%c3_137, %c0_138, %c0_139] : memref<4x1x32xf32, #tpu.memory_space<vmem>>, vector<1x1x32xf32>
    %217 = vector.shape_cast %216 : vector<1x1x32xf32> to vector<1x32xf32>
    %218 = vector.broadcast %217 : vector<1x32xf32> to vector<16x32xf32>
    %219 = arith.mulf %202, %218 : vector<16x32xf32>
    %220 = tpu.concatenate %207, %211, %215, %219 in 0 : vector<16x32xf32>, vector<16x32xf32>, vector<16x32xf32>, vector<16x32xf32> -> vector<64x32xf32>
    %c0_140 = arith.constant 0 : index
    %c0_141 = arith.constant 0 : index
    %c0_142 = arith.constant 0 : index
    %221 = vector.load %arg10[%c0_140, %c0_141, %c0_142] : memref<4x1x32xf32, #tpu.memory_space<vmem>>, vector<1x1x32xf32>
    %222 = vector.shape_cast %221 : vector<1x1x32xf32> to vector<1x32xf32>
    %223 = vector.broadcast %222 : vector<1x32xf32> to vector<16x32xf32>
    %224 = arith.mulf %203, %223 : vector<16x32xf32>
    %c1_143 = arith.constant 1 : index
    %c0_144 = arith.constant 0 : index
    %c0_145 = arith.constant 0 : index
    %225 = vector.load %arg10[%c1_143, %c0_144, %c0_145] : memref<4x1x32xf32, #tpu.memory_space<vmem>>, vector<1x1x32xf32>
    %226 = vector.shape_cast %225 : vector<1x1x32xf32> to vector<1x32xf32>
    %227 = vector.broadcast %226 : vector<1x32xf32> to vector<16x32xf32>
    %228 = arith.mulf %203, %227 : vector<16x32xf32>
    %c2_146 = arith.constant 2 : index
    %c0_147 = arith.constant 0 : index
    %c0_148 = arith.constant 0 : index
    %229 = vector.load %arg10[%c2_146, %c0_147, %c0_148] : memref<4x1x32xf32, #tpu.memory_space<vmem>>, vector<1x1x32xf32>
    %230 = vector.shape_cast %229 : vector<1x1x32xf32> to vector<1x32xf32>
    %231 = vector.broadcast %230 : vector<1x32xf32> to vector<16x32xf32>
    %232 = arith.mulf %203, %231 : vector<16x32xf32>
    %c3_149 = arith.constant 3 : index
    %c0_150 = arith.constant 0 : index
    %c0_151 = arith.constant 0 : index
    %233 = vector.load %arg10[%c3_149, %c0_150, %c0_151] : memref<4x1x32xf32, #tpu.memory_space<vmem>>, vector<1x1x32xf32>
    %234 = vector.shape_cast %233 : vector<1x1x32xf32> to vector<1x32xf32>
    %235 = vector.broadcast %234 : vector<1x32xf32> to vector<16x32xf32>
    %236 = arith.mulf %203, %235 : vector<16x32xf32>
    %237 = tpu.concatenate %224, %228, %232, %236 in 0 : vector<16x32xf32>, vector<16x32xf32>, vector<16x32xf32>, vector<16x32xf32> -> vector<64x32xf32>
    "tpu.trace_start"() <{level = 10 : i32, message = "rc,xc->rx"}> : () -> ()
    %cst_152 = arith.constant dense<0.000000e+00> : vector<16x64xf32>
    %238 = tpu.matmul %201, %220, %cst_152 {dimension_numbers = #tpu.dot_dimension_numbers<[1], [1], [0], [0], [0, 0, 1, 0], [], []>} : vector<16x32xf32>, vector<64x32xf32>, vector<16x64xf32> -> vector<16x64xf32>
    "tpu.trace_stop"() : () -> ()
    %239 = arith.addf %238, %7 : vector<16x64xf32>
    %cst_153 = arith.constant dense<0xFF800000> : vector<16xf32>
    %240 = vector.multi_reduction <maximumf>, %239, %cst_153 [1] : vector<16x64xf32> to vector<16xf32>
    %241 = vector.shape_cast %240 : vector<16xf32> to vector<16x1xf32>
    %242 = vector.broadcast %241 : vector<16x1xf32> to vector<16x64xf32>
    %243 = arith.subf %239, %242 : vector<16x64xf32>
    %244 = math.exp %243 : vector<16x64xf32>
    %cst_154 = arith.constant dense<0.000000e+00> : vector<16x64xf32>
    %245 = tpu.matmul %244, %8, %cst_154 {dimension_numbers = #tpu.dot_dimension_numbers<[1], [0], [0], [1], [0, 0, 1, 1], [], []>} : vector<16x64xf32>, vector<64x64xf32>, vector<16x64xf32> -> vector<16x64xf32>
    %246 = arith.divf %244, %245 : vector<16x64xf32>
    %cst_155 = arith.constant dense<0.000000e+00> : vector<16x32xf32>
    %247 = tpu.matmul %246, %237, %cst_155 {dimension_numbers = #tpu.dot_dimension_numbers<[1], [0], [0], [1], [0, 0, 1, 1], [], []>} : vector<16x64xf32>, vector<64x32xf32>, vector<16x32xf32> -> vector<16x32xf32>
    %cst_156 = arith.constant dense<0.000000e+00> : vector<16x16xf32>
    %248 = tpu.matmul %246, %9, %cst_156 {dimension_numbers = #tpu.dot_dimension_numbers<[1], [0], [0], [1], [0, 0, 1, 1], [], []>} : vector<16x64xf32>, vector<64x16xf32>, vector<16x16xf32> -> vector<16x16xf32>
    %c2_157 = arith.constant 2 : index
    %c0_158 = arith.constant 0 : index
    %c0_159 = arith.constant 0 : index
    %249 = vector.load %arg19[%c2_157, %c0_158, %c0_159] : memref<3x16x16xf32, #tpu.memory_space<vmem>>, vector<1x16x16xf32>
    %250 = vector.shape_cast %249 : vector<1x16x16xf32> to vector<16x16xf32>
    %251 = vector.shape_cast %248 : vector<16x16xf32> to vector<1x16x16xf32>
    tpu.vector_store %arg19[%c2_157, %c0_158, %c0_159], %251 {strides = array<i32>} : memref<3x16x16xf32, #tpu.memory_space<vmem>>, vector<1x16x16xf32>,
    %c2_160 = arith.constant 2 : index
    %c0_161 = arith.constant 0 : index
    %c0_162 = arith.constant 0 : index
    %252 = vector.load %arg6[%c2_160, %c0_161, %c0_162] : memref<3x32x32xf32, #tpu.memory_space<vmem>>, vector<1x32x32xf32>
    %253 = vector.shape_cast %252 : vector<1x32x32xf32> to vector<32x32xf32>
    %cst_163 = arith.constant dense<0.000000e+00> : vector<16x32xf32>
    %254 = tpu.matmul %247, %253, %cst_163 {dimension_numbers = #tpu.dot_dimension_numbers<[1], [0], [0], [1], [0, 0, 1, 1], [], []>} : vector<16x32xf32>, vector<32x32xf32>, vector<16x32xf32> -> vector<16x32xf32>
    %c2_164 = arith.constant 2 : index
    %c0_165 = arith.constant 0 : index
    %c0_166 = arith.constant 0 : index
    %255 = vector.load %arg7[%c2_164, %c0_165, %c0_166] : memref<3x1x32xf32, #tpu.memory_space<vmem>>, vector<1x1x32xf32>
    %256 = vector.shape_cast %255 : vector<1x1x32xf32> to vector<1x32xf32>
    %257 = vector.broadcast %256 : vector<1x32xf32> to vector<16x32xf32>
    %258 = arith.addf %254, %257 : vector<16x32xf32>
    %259 = arith.addf %193, %258 : vector<16x32xf32>
    %cst_167 = arith.constant dense<0.000000e+00> : vector<16xf32>
    %260 = vector.multi_reduction <add>, %259, %cst_167 [1] : vector<16x32xf32> to vector<16xf32>
    %261 = vector.shape_cast %260 : vector<16xf32> to vector<16x1xf32>
    %cst_168 = arith.constant 3.200000e+01 : f32
    %262 = vector.broadcast %cst_168 : f32 to vector<16x1xf32>
    %263 = arith.divf %261, %262 : vector<16x1xf32>
    %264 = vector.broadcast %263 : vector<16x1xf32> to vector<16x32xf32>
    %265 = arith.subf %259, %264 : vector<16x32xf32>
    %266 = arith.mulf %265, %265 : vector<16x32xf32>
    %cst_169 = arith.constant dense<0.000000e+00> : vector<16xf32>
    %267 = vector.multi_reduction <add>, %266, %cst_169 [1] : vector<16x32xf32> to vector<16xf32>
    %268 = vector.shape_cast %267 : vector<16xf32> to vector<16x1xf32>
    %cst_170 = arith.constant 3.200000e+01 : f32
    %269 = vector.broadcast %cst_170 : f32 to vector<16x1xf32>
    %270 = arith.divf %268, %269 : vector<16x1xf32>
    %271 = vector.broadcast %263 : vector<16x1xf32> to vector<16x32xf32>
    %272 = arith.subf %259, %271 : vector<16x32xf32>
    %cst_171 = arith.constant 9.99999974E-6 : f32
    %273 = vector.broadcast %cst_171 : f32 to vector<16x1xf32>
    %274 = arith.addf %270, %273 : vector<16x1xf32>
    %275 = math.rsqrt %274 : vector<16x1xf32>
    %276 = vector.broadcast %275 : vector<16x1xf32> to vector<16x32xf32>
    %277 = arith.mulf %272, %276 : vector<16x32xf32>
    %c2_172 = arith.constant 2 : index
    %c0_173 = arith.constant 0 : index
    %c0_174 = arith.constant 0 : index
    %278 = vector.load %arg8[%c2_172, %c0_173, %c0_174] : memref<3x1x32xf32, #tpu.memory_space<vmem>>, vector<1x1x32xf32>
    %279 = vector.shape_cast %278 : vector<1x1x32xf32> to vector<1x32xf32>
    %280 = vector.broadcast %279 : vector<1x32xf32> to vector<16x32xf32>
    %281 = arith.mulf %277, %280 : vector<16x32xf32>
    %c2_175 = arith.constant 2 : index
    %c0_176 = arith.constant 0 : index
    %c0_177 = arith.constant 0 : index
    %282 = vector.load %arg9[%c2_175, %c0_176, %c0_177] : memref<3x1x32xf32, #tpu.memory_space<vmem>>, vector<1x1x32xf32>
    %283 = vector.shape_cast %282 : vector<1x1x32xf32> to vector<1x32xf32>
    %284 = vector.broadcast %283 : vector<1x32xf32> to vector<16x32xf32>
    %285 = arith.addf %281, %284 : vector<16x32xf32>
    %286 = vector.shape_cast %285 : vector<16x32xf32> to vector<2x8x32xf32>
    %cst_178 = arith.constant 0.000000e+00 : f32
    %287 = vector.broadcast %cst_178 : f32 to vector<2x32xf32>
    %288 = vector.extract_strided_slice %286 {offsets = [0, 0, 0], sizes = [2, 1, 32], strides = [1, 1, 1]} : vector<2x8x32xf32> to vector<2x1x32xf32>
    %289 = vector.shape_cast %288 : vector<2x1x32xf32> to vector<2x32xf32>
    %c0_179 = arith.constant 0 : index
    %c0_180 = arith.constant 0 : index
    %c0_181 = arith.constant 0 : index
    %290 = vector.load %arg14[%c0_179, %c0_180, %c0_181] : memref<8x32x32xf32, #tpu.memory_space<vmem>>, vector<1x32x32xf32>
    %291 = vector.shape_cast %290 : vector<1x32x32xf32> to vector<32x32xf32>
    %cst_182 = arith.constant dense<0.000000e+00> : vector<2x32xf32>
    %292 = tpu.matmul %289, %291, %cst_182 {dimension_numbers = #tpu.dot_dimension_numbers<[1], [0], [0], [1], [0, 0, 1, 1], [], []>} : vector<2x32xf32>, vector<32x32xf32>, vector<2x32xf32> -> vector<2x32xf32>
    %293 = arith.addf %287, %292 : vector<2x32xf32>
    %294 = vector.extract_strided_slice %286 {offsets = [0, 1, 0], sizes = [2, 1, 32], strides = [1, 1, 1]} : vector<2x8x32xf32> to vector<2x1x32xf32>
    %295 = vector.shape_cast %294 : vector<2x1x32xf32> to vector<2x32xf32>
    %c1_183 = arith.constant 1 : index
    %c0_184 = arith.constant 0 : index
    %c0_185 = arith.constant 0 : index
    %296 = vector.load %arg14[%c1_183, %c0_184, %c0_185] : memref<8x32x32xf32, #tpu.memory_space<vmem>>, vector<1x32x32xf32>
    %297 = vector.shape_cast %296 : vector<1x32x32xf32> to vector<32x32xf32>
    %cst_186 = arith.constant dense<0.000000e+00> : vector<2x32xf32>
    %298 = tpu.matmul %295, %297, %cst_186 {dimension_numbers = #tpu.dot_dimension_numbers<[1], [0], [0], [1], [0, 0, 1, 1], [], []>} : vector<2x32xf32>, vector<32x32xf32>, vector<2x32xf32> -> vector<2x32xf32>
    %299 = arith.addf %293, %298 : vector<2x32xf32>
    %300 = vector.extract_strided_slice %286 {offsets = [0, 2, 0], sizes = [2, 1, 32], strides = [1, 1, 1]} : vector<2x8x32xf32> to vector<2x1x32xf32>
    %301 = vector.shape_cast %300 : vector<2x1x32xf32> to vector<2x32xf32>
    %c2_187 = arith.constant 2 : index
    %c0_188 = arith.constant 0 : index
    %c0_189 = arith.constant 0 : index
    %302 = vector.load %arg14[%c2_187, %c0_188, %c0_189] : memref<8x32x32xf32, #tpu.memory_space<vmem>>, vector<1x32x32xf32>
    %303 = vector.shape_cast %302 : vector<1x32x32xf32> to vector<32x32xf32>
    %cst_190 = arith.constant dense<0.000000e+00> : vector<2x32xf32>
    %304 = tpu.matmul %301, %303, %cst_190 {dimension_numbers = #tpu.dot_dimension_numbers<[1], [0], [0], [1], [0, 0, 1, 1], [], []>} : vector<2x32xf32>, vector<32x32xf32>, vector<2x32xf32> -> vector<2x32xf32>
    %305 = arith.addf %299, %304 : vector<2x32xf32>
    %306 = vector.extract_strided_slice %286 {offsets = [0, 3, 0], sizes = [2, 1, 32], strides = [1, 1, 1]} : vector<2x8x32xf32> to vector<2x1x32xf32>
    %307 = vector.shape_cast %306 : vector<2x1x32xf32> to vector<2x32xf32>
    %c3_191 = arith.constant 3 : index
    %c0_192 = arith.constant 0 : index
    %c0_193 = arith.constant 0 : index
    %308 = vector.load %arg14[%c3_191, %c0_192, %c0_193] : memref<8x32x32xf32, #tpu.memory_space<vmem>>, vector<1x32x32xf32>
    %309 = vector.shape_cast %308 : vector<1x32x32xf32> to vector<32x32xf32>
    %cst_194 = arith.constant dense<0.000000e+00> : vector<2x32xf32>
    %310 = tpu.matmul %307, %309, %cst_194 {dimension_numbers = #tpu.dot_dimension_numbers<[1], [0], [0], [1], [0, 0, 1, 1], [], []>} : vector<2x32xf32>, vector<32x32xf32>, vector<2x32xf32> -> vector<2x32xf32>
    %311 = arith.addf %305, %310 : vector<2x32xf32>
    %312 = vector.extract_strided_slice %286 {offsets = [0, 4, 0], sizes = [2, 1, 32], strides = [1, 1, 1]} : vector<2x8x32xf32> to vector<2x1x32xf32>
    %313 = vector.shape_cast %312 : vector<2x1x32xf32> to vector<2x32xf32>
    %c4 = arith.constant 4 : index
    %c0_195 = arith.constant 0 : index
    %c0_196 = arith.constant 0 : index
    %314 = vector.load %arg14[%c4, %c0_195, %c0_196] : memref<8x32x32xf32, #tpu.memory_space<vmem>>, vector<1x32x32xf32>
    %315 = vector.shape_cast %314 : vector<1x32x32xf32> to vector<32x32xf32>
    %cst_197 = arith.constant dense<0.000000e+00> : vector<2x32xf32>
    %316 = tpu.matmul %313, %315, %cst_197 {dimension_numbers = #tpu.dot_dimension_numbers<[1], [0], [0], [1], [0, 0, 1, 1], [], []>} : vector<2x32xf32>, vector<32x32xf32>, vector<2x32xf32> -> vector<2x32xf32>
    %317 = arith.addf %311, %316 : vector<2x32xf32>
    %318 = vector.extract_strided_slice %286 {offsets = [0, 5, 0], sizes = [2, 1, 32], strides = [1, 1, 1]} : vector<2x8x32xf32> to vector<2x1x32xf32>
    %319 = vector.shape_cast %318 : vector<2x1x32xf32> to vector<2x32xf32>
    %c5 = arith.constant 5 : index
    %c0_198 = arith.constant 0 : index
    %c0_199 = arith.constant 0 : index
    %320 = vector.load %arg14[%c5, %c0_198, %c0_199] : memref<8x32x32xf32, #tpu.memory_space<vmem>>, vector<1x32x32xf32>
    %321 = vector.shape_cast %320 : vector<1x32x32xf32> to vector<32x32xf32>
    %cst_200 = arith.constant dense<0.000000e+00> : vector<2x32xf32>
    %322 = tpu.matmul %319, %321, %cst_200 {dimension_numbers = #tpu.dot_dimension_numbers<[1], [0], [0], [1], [0, 0, 1, 1], [], []>} : vector<2x32xf32>, vector<32x32xf32>, vector<2x32xf32> -> vector<2x32xf32>
    %323 = arith.addf %317, %322 : vector<2x32xf32>
    %324 = vector.extract_strided_slice %286 {offsets = [0, 6, 0], sizes = [2, 1, 32], strides = [1, 1, 1]} : vector<2x8x32xf32> to vector<2x1x32xf32>
    %325 = vector.shape_cast %324 : vector<2x1x32xf32> to vector<2x32xf32>
    %c6 = arith.constant 6 : index
    %c0_201 = arith.constant 0 : index
    %c0_202 = arith.constant 0 : index
    %326 = vector.load %arg14[%c6, %c0_201, %c0_202] : memref<8x32x32xf32, #tpu.memory_space<vmem>>, vector<1x32x32xf32>
    %327 = vector.shape_cast %326 : vector<1x32x32xf32> to vector<32x32xf32>
    %cst_203 = arith.constant dense<0.000000e+00> : vector<2x32xf32>
    %328 = tpu.matmul %325, %327, %cst_203 {dimension_numbers = #tpu.dot_dimension_numbers<[1], [0], [0], [1], [0, 0, 1, 1], [], []>} : vector<2x32xf32>, vector<32x32xf32>, vector<2x32xf32> -> vector<2x32xf32>
    %329 = arith.addf %323, %328 : vector<2x32xf32>
    %330 = vector.extract_strided_slice %286 {offsets = [0, 7, 0], sizes = [2, 1, 32], strides = [1, 1, 1]} : vector<2x8x32xf32> to vector<2x1x32xf32>
    %331 = vector.shape_cast %330 : vector<2x1x32xf32> to vector<2x32xf32>
    %c7 = arith.constant 7 : index
    %c0_204 = arith.constant 0 : index
    %c0_205 = arith.constant 0 : index
    %332 = vector.load %arg14[%c7, %c0_204, %c0_205] : memref<8x32x32xf32, #tpu.memory_space<vmem>>, vector<1x32x32xf32>
    %333 = vector.shape_cast %332 : vector<1x32x32xf32> to vector<32x32xf32>
    %cst_206 = arith.constant dense<0.000000e+00> : vector<2x32xf32>
    %334 = tpu.matmul %331, %333, %cst_206 {dimension_numbers = #tpu.dot_dimension_numbers<[1], [0], [0], [1], [0, 0, 1, 1], [], []>} : vector<2x32xf32>, vector<32x32xf32>, vector<2x32xf32> -> vector<2x32xf32>
    %335 = arith.addf %329, %334 : vector<2x32xf32>
    %c0_207 = arith.constant 0 : index
    %c0_208 = arith.constant 0 : index
    %336 = vector.load %arg15[%c0_207, %c0_208] : memref<1x32xf32, #tpu.memory_space<vmem>>, vector<1x32xf32>
    %337 = vector.broadcast %336 : vector<1x32xf32> to vector<2x32xf32>
    %338 = arith.addf %335, %337 : vector<2x32xf32>
    %cst_209 = arith.constant 0.000000e+00 : f32
    %339 = vector.broadcast %cst_209 : f32 to vector<2x32xf32>
    %340 = arith.maximumf %338, %339 : vector<2x32xf32>
    %c0_210 = arith.constant 0 : index
    %c0_211 = arith.constant 0 : index
    %341 = vector.load %arg16[%c0_210, %c0_211] : memref<1x32xf32, #tpu.memory_space<vmem>>, vector<1x32xf32>
    %342 = vector.broadcast %341 : vector<1x32xf32> to vector<2x32xf32>
    %343 = arith.mulf %340, %342 : vector<2x32xf32>
    %cst_212 = arith.constant dense<0.000000e+00> : vector<2xf32>
    %344 = vector.multi_reduction <add>, %343, %cst_212 [1] : vector<2x32xf32> to vector<2xf32>
    %345 = vector.shape_cast %344 : vector<2xf32> to vector<2x1xf32>
    %c0_213 = arith.constant 0 : index
    %c0_214 = arith.constant 0 : index
    %346 = vector.load %arg17[%c0_213, %c0_214] : memref<1x1xf32, #tpu.memory_space<vmem>>, vector<1x1xf32>
    %347 = vector.broadcast %346 : vector<1x1xf32> to vector<2x1xf32>
    %348 = arith.addf %345, %347 : vector<2x1xf32>
    %cst_215 = arith.constant 2.000000e+01 : f32
    %349 = vector.broadcast %cst_215 : f32 to vector<2x1xf32>
    %350 = arith.cmpf ogt, %348, %349 : vector<2x1xf32>
    %cst_216 = arith.constant 2.000000e+01 : f32
    %351 = vector.broadcast %cst_216 : f32 to vector<2x1xf32>
    %352 = arith.minimumf %348, %351 : vector<2x1xf32>
    %353 = math.exp %352 : vector<2x1xf32>
    %354 = math.log1p %353 : vector<2x1xf32>
    %355 = arith.select %350, %348, %354 : vector<2x1xi1>, vector<2x1xf32>
    %c0_217 = arith.constant 0 : index
    %c0_218 = arith.constant 0 : index
    %356 = vector.load %arg18[%c0_217, %c0_218] : memref<2x1xf32, #tpu.memory_space<vmem>>, vector<2x1xf32>
    tpu.vector_store %arg18[%c0_217, %c0_218], %355 {strides = array<i32>} : memref<2x1xf32, #tpu.memory_space<vmem>>, vector<2x1xf32>,
    return
  }
  func.func @transform_0(%arg0: i32) -> (i32, i32) {
    %c0_i32 = arith.constant 0 : i32
    %c0_i32_0 = arith.constant 0 : i32
    %c0_i32_1 = arith.constant 0 : i32
    return %c0_i32, %c0_i32_0 : i32, i32
  }
  func.func @transform_1(%arg0: i32) -> (i32, i32) {
    %c0_i32 = arith.constant 0 : i32
    %c0_i32_0 = arith.constant 0 : i32
    %c0_i32_1 = arith.constant 0 : i32
    return %c0_i32, %c0_i32_0 : i32, i32
  }
  func.func @transform_2(%arg0: i32) -> (i32, i32) {
    %c0_i32 = arith.constant 0 : i32
    %c0_i32_0 = arith.constant 0 : i32
    %c0_i32_1 = arith.constant 0 : i32
    return %c0_i32, %c0_i32_0 : i32, i32
  }
  func.func @transform_3(%arg0: i32) -> (i32, i32, i32) {
    %c0_i32 = arith.constant 0 : i32
    %c0_i32_0 = arith.constant 0 : i32
    %c0_i32_1 = arith.constant 0 : i32
    %c0_i32_2 = arith.constant 0 : i32
    return %c0_i32, %c0_i32_0, %c0_i32_1 : i32, i32, i32
  }
  func.func @transform_4(%arg0: i32) -> (i32, i32, i32) {
    %c0_i32 = arith.constant 0 : i32
    %c0_i32_0 = arith.constant 0 : i32
    %c0_i32_1 = arith.constant 0 : i32
    %c0_i32_2 = arith.constant 0 : i32
    return %c0_i32, %c0_i32_0, %c0_i32_1 : i32, i32, i32
  }
  func.func @transform_5(%arg0: i32) -> (i32, i32, i32) {
    %c0_i32 = arith.constant 0 : i32
    %c0_i32_0 = arith.constant 0 : i32
    %c0_i32_1 = arith.constant 0 : i32
    %c0_i32_2 = arith.constant 0 : i32
    return %c0_i32, %c0_i32_0, %c0_i32_1 : i32, i32, i32
  }
  func.func @transform_6(%arg0: i32) -> (i32, i32, i32) {
    %c0_i32 = arith.constant 0 : i32
    %c0_i32_0 = arith.constant 0 : i32
    %c0_i32_1 = arith.constant 0 : i32
    %c0_i32_2 = arith.constant 0 : i32
    return %c0_i32, %c0_i32_0, %c0_i32_1 : i32, i32, i32
  }
  func.func @transform_7(%arg0: i32) -> (i32, i32, i32) {
    %c0_i32 = arith.constant 0 : i32
    %c0_i32_0 = arith.constant 0 : i32
    %c0_i32_1 = arith.constant 0 : i32
    %c0_i32_2 = arith.constant 0 : i32
    return %c0_i32, %c0_i32_0, %c0_i32_1 : i32, i32, i32
  }
  func.func @transform_8(%arg0: i32) -> (i32, i32, i32) {
    %c0_i32 = arith.constant 0 : i32
    %c0_i32_0 = arith.constant 0 : i32
    %c0_i32_1 = arith.constant 0 : i32
    %c0_i32_2 = arith.constant 0 : i32
    return %c0_i32, %c0_i32_0, %c0_i32_1 : i32, i32, i32
  }
  func.func @transform_9(%arg0: i32) -> (i32, i32, i32) {
    %c0_i32 = arith.constant 0 : i32
    %c0_i32_0 = arith.constant 0 : i32
    %c0_i32_1 = arith.constant 0 : i32
    %c0_i32_2 = arith.constant 0 : i32
    return %c0_i32, %c0_i32_0, %c0_i32_1 : i32, i32, i32
  }
  func.func @transform_10(%arg0: i32) -> (i32, i32) {
    %c0_i32 = arith.constant 0 : i32
    %c0_i32_0 = arith.constant 0 : i32
    %c0_i32_1 = arith.constant 0 : i32
    return %c0_i32, %c0_i32_0 : i32, i32
  }
  func.func @transform_11(%arg0: i32) -> (i32, i32) {
    %c0_i32 = arith.constant 0 : i32
    %c0_i32_0 = arith.constant 0 : i32
    %c0_i32_1 = arith.constant 0 : i32
    return %c0_i32, %c0_i32_0 : i32, i32
  }
  func.func @transform_12(%arg0: i32) -> (i32, i32) {
    %c0_i32 = arith.constant 0 : i32
    %c0_i32_0 = arith.constant 0 : i32
    %c0_i32_1 = arith.constant 0 : i32
    return %c0_i32, %c0_i32_0 : i32, i32
  }
  func.func @transform_13(%arg0: i32) -> (i32, i32, i32) {
    %c0_i32 = arith.constant 0 : i32
    %c0_i32_0 = arith.constant 0 : i32
    %c0_i32_1 = arith.constant 0 : i32
    %c0_i32_2 = arith.constant 0 : i32
    return %c0_i32, %c0_i32_0, %c0_i32_1 : i32, i32, i32
  }
  func.func @transform_14(%arg0: i32) -> (i32, i32) {
    %c0_i32 = arith.constant 0 : i32
    %c0_i32_0 = arith.constant 0 : i32
    %c0_i32_1 = arith.constant 0 : i32
    return %c0_i32, %c0_i32_0 : i32, i32
  }
  func.func @transform_15(%arg0: i32) -> (i32, i32) {
    %c0_i32 = arith.constant 0 : i32
    %c0_i32_0 = arith.constant 0 : i32
    %c0_i32_1 = arith.constant 0 : i32
    return %c0_i32, %c0_i32_0 : i32, i32
  }
  func.func @transform_16(%arg0: i32) -> (i32, i32) {
    %c0_i32 = arith.constant 0 : i32
    %c0_i32_0 = arith.constant 0 : i32
    %c0_i32_1 = arith.constant 0 : i32
    return %c0_i32, %c0_i32_0 : i32, i32
  }
  func.func @transform_17(%arg0: i32) -> (i32, i32) {
    %c0_i32 = arith.constant 0 : i32
    %c0_i32_0 = arith.constant 0 : i32
    %c0_i32_1 = arith.constant 0 : i32
    return %c0_i32, %c0_i32_0 : i32, i32
  }
  func.func @transform_18(%arg0: i32) -> (i32, i32, i32) {
    %c0_i32 = arith.constant 0 : i32
    %c0_i32_0 = arith.constant 0 : i32
    %c0_i32_1 = arith.constant 0 : i32
    %c0_i32_2 = arith.constant 0 : i32
    return %c0_i32, %c0_i32_0, %c0_i32_1 : i32, i32, i32
  }
}

</mosaic_0001>

<llo_original>
// kernel: tpu_custom_call.1
$region0: #{tpu_custom_call.1}
  #allocation0 [shape = 'u32[]', space=smem, size = 0x4, offset = 0x4, fixed_abs, tag = 'smem constant byte address 0x4 - core index']
  #allocation1 [shape = 'u32[72,128]{1,0:T(1,128)}', space=vmem, size = 0x9000, scoped, tag = 'internal scratch']
  #allocation2 [shape = 'f32[1,1]{1,0:T(1,128)S(1)}', space=vmem, size = 0x200, scoped, tag = 'scoped memory for tpu_custom_call.1']
  %s0 = inlined_call_operand.vmem [shape: f32[16,1], index: 0, kind: input, shape index: {}]
  %s1 = inlined_call_operand.vmem [shape: f32[1,32], index: 1, kind: input, shape index: {}]
  %s2 = inlined_call_operand.vmem [shape: f32[16,32], index: 2, kind: input, shape index: {}]
  %s3 = inlined_call_operand.hbm [shape: f32[3,32,96], index: 3, kind: input, shape index: {}]
  %s4 = inlined_call_operand.vmem [shape: f32[3,1,96], index: 4, kind: input, shape index: {}]
  %s5 = inlined_call_operand.hbm [shape: f32[3,32,32], index: 5, kind: input, shape index: {}]
  %s6 = inlined_call_operand.vmem [shape: f32[3,1,32], index: 6, kind: input, shape index: {}]
  %s7 = inlined_call_operand.vmem [shape: f32[3,1,32], index: 7, kind: input, shape index: {}]
  %s8 = inlined_call_operand.hbm [shape: f32[3,1,32], index: 8, kind: input, shape index: {}]
  %s9 = inlined_call_operand.vmem [shape: f32[4,1,32], index: 9, kind: input, shape index: {}]
  %s10 = inlined_call_operand.hbm [shape: f32[16,64], index: 10, kind: input, shape index: {}]
  %s11 = inlined_call_operand.vmem [shape: f32[64,64], index: 11, kind: input, shape index: {}]
  %s12 = inlined_call_operand.vmem [shape: f32[64,16], index: 12, kind: input, shape index: {}]
  %s13 = inlined_call_operand.hbm [shape: f32[8,32,32], index: 13, kind: input, shape index: {}]
  %s14 = inlined_call_operand.vmem [shape: f32[1,32], index: 14, kind: input, shape index: {}]
  %s15 = inlined_call_operand.vmem [shape: f32[1,32], index: 15, kind: input, shape index: {}]
  %s16 = inlined_call_operand.<no memory space> [shape: f32[1,1], index: 16, kind: input, shape index: {}]
  %s17 = inlined_call_operand.vmem [shape: f32[2,1], index: 17, kind: output, shape index: {0}]
  %s18 = inlined_call_operand.hbm [shape: f32[3,16,16], index: 18, kind: output, shape index: {1}]
  %19 = xla_tuple %s17, %s18
  %s20 = sld [smem:[#allocation0]]
  $region106: #{tpu_custom_call.1} parent=0
    _
  %s22 = ssub.s32 1, %s20
  %s23 = scalar_select 0, %s22, %s20
  %v24 = vstv %s16
  %25 = vst [vmem:[#allocation2] sm:$0x1] %v24
  $region1: #{tpu_custom_call.1} parent=0
    #allocation3 [shape = 'u8[49152]{0}', space=vmem, size = 0xc000, scoped, tag = 'input window, operand 3, single buffered']
    #allocation4 [shape = 's32[1]{0}', space=sflag, size = 0x4, scoped, tag = 'scoped memory for tpu_custom_call.1']
    #allocation5 [shape = 's32[1]{0}', space=sflag, size = 0x4, scoped, tag = 'scoped memory for tpu_custom_call.1']
    #allocation6 [shape = 'u8[49152]{0}', space=vmem, size = 0xc000, scoped, tag = 'input window, operand 5, single buffered']
    #allocation7 [shape = 's32[1]{0}', space=sflag, size = 0x4, scoped, tag = 'scoped memory for tpu_custom_call.1']
    #allocation8 [shape = 'u8[1536]{0}', space=vmem, size = 0x800, scoped, tag = 'input window, operand 8, single buffered']
    #allocation9 [shape = 'u8[8192]{0}', space=vmem, size = 0x2000, scoped, tag = 'input window, operand 10, single buffered']
    #allocation10 [shape = 's32[1]{0}', space=sflag, size = 0x4, scoped, tag = 'scoped memory for tpu_custom_call.1']
    #allocation11 [shape = 'u8[131072]{0}', space=vmem, size = 0x20000, scoped, tag = 'input window, operand 13, single buffered']
    #allocation12 [shape = 'u8[24576]{0}', space=vmem, size = 0x6000, scoped, tag = 'output window, operand 1, single buffered']
    %26 = vsyncpa [#allocation4], 0
    %27 = vsyncpa [#allocation7], 0
    %28 = vsyncpa [#allocation10], 0
    %29 = vsyncpa [#allocation5], 0
    // Predicated region
    $region2: #{tpu_custom_call.1} parent=1 // pred_check
      _
    $region3: #{tpu_custom_call.1} parent=1 // pred_check_branch
      %31 = sbr.rel (0) target = $region5
    $region4: #{tpu_custom_call.1} parent=1 // pred_region
      _
    $region5: #{tpu_custom_call.1} parent=1 // pred_fallthru
      _
    // Predicated region
    $region6: #{tpu_custom_call.1} parent=1 // pred_check
      _
    $region7: #{tpu_custom_call.1} parent=1 // pred_check_branch
      %33 = sbr.rel (0) target = $region9
    $region8: #{tpu_custom_call.1} parent=1 // pred_region
      _
    $region9: #{tpu_custom_call.1} parent=1 // pred_fallthru
      _
    // Predicated region
    $region10: #{tpu_custom_call.1} parent=1 // pred_check
      _
    $region11: #{tpu_custom_call.1} parent=1 // pred_check_branch
      %35 = sbr.rel (0) target = $region13
    $region12: #{tpu_custom_call.1} parent=1 // pred_region
      _
    $region13: #{tpu_custom_call.1} parent=1 // pred_fallthru
      _
    // Predicated region
    $region14: #{tpu_custom_call.1} parent=1 // pred_check
      _
    $region15: #{tpu_custom_call.1} parent=1 // pred_check_branch
      %37 = sbr.rel (0) target = $region17
    $region16: #{tpu_custom_call.1} parent=1 // pred_region
      %39 = vsyncadd [#allocation4], 0
      %s40 = sshll.u32 %s3, 4
      %s41 = int_to_ptr.hbm [resolvable:$true] %s40
      %s42 = sshll.u32 [#allocation3], 4
      %s43 = int_to_ptr.vmem [resolvable:$true] %s42
      %48 = dma.hbm_to_vmem [thread:$0]  %s41, 1536, %s43, [#allocation4], 128, 128, 8
    $region17: #{tpu_custom_call.1} parent=1 // pred_fallthru
      _
    // Predicated region
    $region18: #{tpu_custom_call.1} parent=1 // pred_check
      _
    $region19: #{tpu_custom_call.1} parent=1 // pred_check_branch
      %50 = sbr.rel (0) target = $region21
    $region20: #{tpu_custom_call.1} parent=1 // pred_region
      _
    $region21: #{tpu_custom_call.1} parent=1 // pred_fallthru
      _
    // Predicated region
    $region22: #{tpu_custom_call.1} parent=1 // pred_check
      _
    $region23: #{tpu_custom_call.1} parent=1 // pred_check_branch
      %52 = sbr.rel (0) target = $region25
    $region24: #{tpu_custom_call.1} parent=1 // pred_region
      %54 = vsyncadd [#allocation7], 0
      %s55 = sshll.u32 %s5, 4
      %s56 = int_to_ptr.hbm [resolvable:$true] %s55
      %s57 = sshll.u32 [#allocation6], 4
      %s58 = int_to_ptr.vmem [resolvable:$true] %s57
      %63 = dma.hbm_to_vmem [thread:$0]  %s56, 1536, %s58, [#allocation7], 128, 128, 8
    $region25: #{tpu_custom_call.1} parent=1 // pred_fallthru
      _
    // Predicated region
    $region26: #{tpu_custom_call.1} parent=1 // pred_check
      _
    $region27: #{tpu_custom_call.1} parent=1 // pred_check_branch
      %65 = sbr.rel (0) target = $region29
    $region28: #{tpu_custom_call.1} parent=1 // pred_region
      _
    $region29: #{tpu_custom_call.1} parent=1 // pred_fallthru
      _
    // Predicated region
    $region30: #{tpu_custom_call.1} parent=1 // pred_check
      _
    $region31: #{tpu_custom_call.1} parent=1 // pred_check_branch
      %67 = sbr.rel (0) target = $region33
    $region32: #{tpu_custom_call.1} parent=1 // pred_region
      _
    $region33: #{tpu_custom_call.1} parent=1 // pred_fallthru
      _
    // Predicated region
    $region34: #{tpu_custom_call.1} parent=1 // pred_check
      _
    $region35: #{tpu_custom_call.1} parent=1 // pred_check_branch
      %69 = sbr.rel (0) target = $region37
    $region36: #{tpu_custom_call.1} parent=1 // pred_region
      %71 = vsyncadd [#allocation7], 0
      %s72 = sshll.u32 %s8, 4
      %s73 = int_to_ptr.hbm [resolvable:$true] %s72
      %s74 = sshll.u32 [#allocation8], 4
      %s75 = int_to_ptr.vmem [resolvable:$true] %s74
      %80 = dma.hbm_to_vmem [thread:$0]  %s73, 48, %s75, [#allocation7], 16, 16, 1
    $region37: #{tpu_custom_call.1} parent=1 // pred_fallthru
      _
    // Predicated region
    $region38: #{tpu_custom_call.1} parent=1 // pred_check
      _
    $region39: #{tpu_custom_call.1} parent=1 // pred_check_branch
      %82 = sbr.rel (0) target = $region41
    $region40: #{tpu_custom_call.1} parent=1 // pred_region
      _
    $region41: #{tpu_custom_call.1} parent=1 // pred_fallthru
      _
    // Predicated region
    $region42: #{tpu_custom_call.1} parent=1 // pred_check
      _
    $region43: #{tpu_custom_call.1} parent=1 // pred_check_branch
      %84 = sbr.rel (0) target = $region45
    $region44: #{tpu_custom_call.1} parent=1 // pred_region
      %86 = vsyncadd [#allocation10], 0
      %s87 = sshll.u32 %s10, 4
      %s88 = int_to_ptr.hbm [resolvable:$true] %s87
      %s89 = sshll.u32 [#allocation9], 4
      %s90 = int_to_ptr.vmem [resolvable:$true] %s89
      %95 = dma.hbm_to_vmem [thread:$0]  %s88, 256, %s90, [#allocation10], 128, 128, 8
    $region45: #{tpu_custom_call.1} parent=1 // pred_fallthru
      _
    // Predicated region
    $region46: #{tpu_custom_call.1} parent=1 // pred_check
      _
    $region47: #{tpu_custom_call.1} parent=1 // pred_check_branch
      %97 = sbr.rel (0) target = $region49
    $region48: #{tpu_custom_call.1} parent=1 // pred_region
      _
    $region49: #{tpu_custom_call.1} parent=1 // pred_fallthru
      _
    // Predicated region
    $region50: #{tpu_custom_call.1} parent=1 // pred_check
      _
    $region51: #{tpu_custom_call.1} parent=1 // pred_check_branch
      %99 = sbr.rel (0) target = $region53
    $region52: #{tpu_custom_call.1} parent=1 // pred_region
      _
    $region53: #{tpu_custom_call.1} parent=1 // pred_fallthru
      _
    // Predicated region
    $region54: #{tpu_custom_call.1} parent=1 // pred_check
      _
    $region55: #{tpu_custom_call.1} parent=1 // pred_check_branch
      %101 = sbr.rel (0) target = $region57
    $region56: #{tpu_custom_call.1} parent=1 // pred_region
      %103 = vsyncadd [#allocation10], 0
      %s104 = sshll.u32 %s13, 4
      %s105 = int_to_ptr.hbm [resolvable:$true] %s104
      %s106 = sshll.u32 [#allocation11], 4
      %s107 = int_to_ptr.vmem [resolvable:$true] %s106
      %112 = dma.hbm_to_vmem [thread:$0]  %s105, 4096, %s107, [#allocation10], 128, 128, 8
    $region57: #{tpu_custom_call.1} parent=1 // pred_fallthru
      _
    // Predicated region
    $region58: #{tpu_custom_call.1} parent=1 // pred_check
      _
    $region59: #{tpu_custom_call.1} parent=1 // pred_check_branch
      %114 = sbr.rel (0) target = $region61
    $region60: #{tpu_custom_call.1} parent=1 // pred_region
      _
    $region61: #{tpu_custom_call.1} parent=1 // pred_fallthru
      _
    // Predicated region
    $region62: #{tpu_custom_call.1} parent=1 // pred_check
      _
    $region63: #{tpu_custom_call.1} parent=1 // pred_check_branch
      %116 = sbr.rel (0) target = $region65
    $region64: #{tpu_custom_call.1} parent=1 // pred_region
      _
    $region65: #{tpu_custom_call.1} parent=1 // pred_fallthru
      _
    // Predicated region
    $region66: #{tpu_custom_call.1} parent=1 // pred_check
      _
    $region67: #{tpu_custom_call.1} parent=1 // pred_check_branch
      %118 = sbr.rel (0) target = $region69
    $region68: #{tpu_custom_call.1} parent=1 // pred_region
      _
    $region69: #{tpu_custom_call.1} parent=1 // pred_fallthru
      _
    // Predicated region
    $region70: #{tpu_custom_call.1} parent=1 // pred_check
      _
    $region71: #{tpu_custom_call.1} parent=1 // pred_check_branch
      %120 = sbr.rel (0) target = $region73
    $region72: #{tpu_custom_call.1} parent=1 // pred_region
      %122 = dma.done [#allocation4], 1536
    $region73: #{tpu_custom_call.1} parent=1 // pred_fallthru
      _
    // Predicated region
    $region74: #{tpu_custom_call.1} parent=1 // pred_check
      _
    $region75: #{tpu_custom_call.1} parent=1 // pred_check_branch
      %124 = sbr.rel (0) target = $region77
    $region76: #{tpu_custom_call.1} parent=1 // pred_region
      %126 = dma.done [#allocation7], 1536
    $region77: #{tpu_custom_call.1} parent=1 // pred_fallthru
      _
    // Predicated region
    $region78: #{tpu_custom_call.1} parent=1 // pred_check
      _
    $region79: #{tpu_custom_call.1} parent=1 // pred_check_branch
      %128 = sbr.rel (0) target = $region81
    $region80: #{tpu_custom_call.1} parent=1 // pred_region
      %130 = dma.done [#allocation7], 48
    $region81: #{tpu_custom_call.1} parent=1 // pred_fallthru
      _
    // Predicated region
    $region82: #{tpu_custom_call.1} parent=1 // pred_check
      _
    $region83: #{tpu_custom_call.1} parent=1 // pred_check_branch
      %132 = sbr.rel (0) target = $region85
    $region84: #{tpu_custom_call.1} parent=1 // pred_region
      %134 = dma.done [#allocation10], 256
    $region85: #{tpu_custom_call.1} parent=1 // pred_fallthru
      _
    // Predicated region
    $region86: #{tpu_custom_call.1} parent=1 // pred_check
      _
    $region87: #{tpu_custom_call.1} parent=1 // pred_check_branch
      %136 = sbr.rel (0) target = $region89
    $region88: #{tpu_custom_call.1} parent=1 // pred_region
      %138 = dma.done [#allocation10], 4096
    $region89: #{tpu_custom_call.1} parent=1 // pred_fallthru
      _
    %v139 = vld [vmem:[%s0] sm:$0xff]
    %v140 = vld [vmem:[%s0 + $0x8] sm:$0xff]
    %v141 = vld [vmem:[%s1] sm:$0x1]
    %143 = vset.pattern.permute.xlu0 0
    %144 = vperm.xlu0 %143, %v139
    %v145 = vpop.permute.xlu0 %144
    %148 = vset.pattern.permute.xlu0 0
    %149 = vperm.xlu0 %148, %v140
    %v150 = vpop.permute.xlu0 %149
    %v153 = vperm.slane %v141, 0
    %v155 = vmul.f32 %v145, %v153
    %v156 = vmul.f32 %v150, %v153
    %v157 = vld [vmem:[%s2] sm:$0xff]
    %v158 = vld [vmem:[%s2 + $0x8] sm:$0xff]
    %v159 = vadd.f32 %v155, %v157
    %v160 = vadd.f32 %v156, %v158
    %v161 = vld [vmem:[#allocation9] sm:$0xff]
    %v162 = vld [vmem:[#allocation9 + $0x8] sm:$0xff]
    %v163 = vld [vmem:[%s11] sm:$0xff]
    %v164 = vld [vmem:[%s11 + $0x8] sm:$0xff]
    %v165 = vld [vmem:[%s11 + $0x10] sm:$0xff]
    %v166 = vld [vmem:[%s11 + $0x18] sm:$0xff]
    %v167 = vld [vmem:[%s11 + $0x20] sm:$0xff]
    %v168 = vld [vmem:[%s11 + $0x28] sm:$0xff]
    %v169 = vld [vmem:[%s11 + $0x30] sm:$0xff]
    %v170 = vld [vmem:[%s11 + $0x38] sm:$0xff]
    %v171 = vld [vmem:[%s12] sm:$0xff]
    %v172 = vld [vmem:[%s12 + $0x8] sm:$0xff]
    %v173 = vld [vmem:[%s12 + $0x10] sm:$0xff]
    %v174 = vld [vmem:[%s12 + $0x18] sm:$0xff]
    %v175 = vld [vmem:[%s12 + $0x20] sm:$0xff]
    %v176 = vld [vmem:[%s12 + $0x28] sm:$0xff]
    %v177 = vld [vmem:[%s12 + $0x30] sm:$0xff]
    %v178 = vld [vmem:[%s12 + $0x38] sm:$0xff]
    %v179 = vld [vmem:[#allocation3] sm:$0xff]
    %v180 = vld [vmem:[#allocation3 + $0x8] sm:$0xff]
    %v181 = vld [vmem:[#allocation3 + $0x10] sm:$0xff]
    %v182 = vld [vmem:[#allocation3 + $0x18] sm:$0xff]
    %v183 = vld [vmem:[%s4] sm:$0x1]
    %v185 = vperm.slane %v183, 0
    %vm187 = vcmask 261120
    %v189 = vsel %vm187, %v159, 0
    %v192 = vsel %vm187, %v160, 0
    %194 = vmatpush.msra.mxu0 0.0
    %195 = vmatpush.msra.mxu0 0.0
    %196 = vmatpush.msra.mxu0 0.0
    %197 = vmatpush.msra.mxu0 0.0
    %198 = vmatpush.msra.mxu0 0.0
    %199 = vmatpush.msra.mxu0 0.0
    %200 = vmatpush.msra.mxu0 0.0
    %201 = vmatpush.msra.mxu0 0.0
    %202 = vmatpush.msra.mxu0 0.0
    %203 = vmatpush.msra.mxu0 0.0
    %204 = vmatpush.msra.mxu0 0.0
    %205 = vmatpush.msra.mxu0 0.0
    %206 = vmatpush.msra.mxu0 %v182
    %207 = vmatpush.msra.mxu0 %v181
    %208 = vmatpush.msra.mxu0 %v180
    %209 = vmatpush.msra.mxu0 %v179
    %210 = vmatmul.f32.gmra.mxu0 %v189
    %v211 = vpop.f32.mrf.mxu0
    %v212 = vadd.f32 %v185, %v211
    %213 = vmatmul.f32.gmra.mxu0 %v192
    %v214 = vpop.f32.mrf.mxu0
    %v215 = vadd.f32 %v185, %v214
    %216 = vdwg.mxu0
    %v217 = vld [vmem:[%s9] sm:$0x1]
    %v219 = vperm.slane %v217, 0
    %220 = vrot.lane.b32.xlu0 %v219, 32
    %v221 = vpop.permute.xlu0 %220
    %v223 = vmul.f32 %v212, %v221
    %v224 = vmul.f32 %v215, %v221
    %s225 = scalar_lea.vmem %s9, 1
    %v226 = vld [vmem:[%s225] sm:$0x1]
    %v228 = vperm.slane %v226, 0
    %229 = vrot.lane.b32.xlu0 %v228, 32
    %v230 = vpop.permute.xlu0 %229
    %v232 = vmul.f32 %v212, %v230
    %v233 = vmul.f32 %v215, %v230
    %s234 = scalar_lea.vmem %s9, 2
    %v235 = vld [vmem:[%s234] sm:$0x1]
    %v237 = vperm.slane %v235, 0
    %238 = vrot.lane.b32.xlu0 %v237, 32
    %v239 = vpop.permute.xlu0 %238
    %v241 = vmul.f32 %v212, %v239
    %v242 = vmul.f32 %v215, %v239
    %s243 = scalar_lea.vmem %s9, 3
    %v244 = vld [vmem:[%s243] sm:$0x1]
    %v246 = vperm.slane %v244, 0
    %247 = vrot.lane.b32.xlu0 %v246, 32
    %v248 = vpop.permute.xlu0 %247
    %v250 = vmul.f32 %v212, %v248
    %v251 = vmul.f32 %v215, %v248
    %252 = vrot.lane.b32.xlu0 %v219, 64
    %v253 = vpop.permute.xlu0 %252
    %v255 = vmul.f32 %v212, %v253
    %v256 = vmul.f32 %v215, %v253
    %257 = vrot.lane.b32.xlu0 %v228, 64
    %v258 = vpop.permute.xlu0 %257
    %v260 = vmul.f32 %v212, %v258
    %v261 = vmul.f32 %v215, %v258
    %262 = vrot.lane.b32.xlu0 %v237, 64
    %v263 = vpop.permute.xlu0 %262
    %v265 = vmul.f32 %v212, %v263
    %v266 = vmul.f32 %v215, %v263
    %267 = vrot.lane.b32.xlu0 %v246, 64
    %v268 = vpop.permute.xlu0 %267
    %v270 = vmul.f32 %v212, %v268
    %v271 = vmul.f32 %v215, %v268
    %280 = vrot.lane.b32.xlu0 %v223, 96
    %v281 = vpop.permute.xlu0 %280
    %282 = vrot.lane.b32.xlu0 %v224, 96
    %v283 = vpop.permute.xlu0 %282
    %284 = vrot.lane.b32.xlu0 %v232, 96
    %v285 = vpop.permute.xlu0 %284
    %286 = vrot.lane.b32.xlu0 %v233, 96
    %v287 = vpop.permute.xlu0 %286
    %288 = vrot.lane.b32.xlu0 %v241, 96
    %v289 = vpop.permute.xlu0 %288
    %290 = vrot.lane.b32.xlu0 %v242, 96
    %v291 = vpop.permute.xlu0 %290
    %292 = vrot.lane.b32.xlu0 %v250, 96
    %v293 = vpop.permute.xlu0 %292
    %294 = vrot.lane.b32.xlu0 %v251, 96
    %v295 = vpop.permute.xlu0 %294
    %v297 = vsel %vm187, %v212, 0
    %v300 = vsel %vm187, %v215, 0
    %v302 = vsel %vm187, %v281, 0
    %v304 = vsel %vm187, %v283, 0
    %v306 = vsel %vm187, %v285, 0
    %v308 = vsel %vm187, %v287, 0
    %v310 = vsel %vm187, %v289, 0
    %v312 = vsel %vm187, %v291, 0
    %v314 = vsel %vm187, %v293, 0
    %v316 = vsel %vm187, %v295, 0
    %318 = vmatpush.xpose.msra.mxu0 0.0
    %319 = vmatpush.xpose.msra.mxu0 0.0
    %320 = vmatpush.xpose.msra.mxu0 0.0
    %321 = vmatpush.xpose.msra.mxu0 0.0
    %322 = vmatpush.xpose.msra.mxu0 0.0
    %323 = vmatpush.xpose.msra.mxu0 0.0
    %324 = vmatpush.xpose.msra.mxu0 0.0
    %325 = vmatpush.xpose.msra.mxu0 0.0
    %326 = vmatpush.xpose.msra.mxu0 %v316
    %327 = vmatpush.xpose.msra.mxu0 %v314
    %328 = vmatpush.xpose.msra.mxu0 %v312
    %329 = vmatpush.xpose.msra.mxu0 %v310
    %330 = vmatpush.xpose.msra.mxu0 %v308
    %331 = vmatpush.xpose.msra.mxu0 %v306
    %332 = vmatpush.xpose.msra.mxu0 %v304
    %333 = vmatpush.xpose.msra.mxu0 %v302
    %334 = vmatmul.f32.gmra.mxu0 %v297
    %v335 = vpop.f32.mrf.mxu0
    %v336 = vadd.f32 %v161, %v335
    %337 = vmatmul.f32.gmra.mxu0 %v300
    %v338 = vpop.f32.mrf.mxu0
    %v339 = vadd.f32 %v162, %v338
    %340 = vdwg.mxu0
    %vm341 = vcmask 523264
    %v342 = vsel %vm341, %v336, -inf
    %343 = vmax.xlane.f32.xlu0 %v342
    %v344 = vpop.xlane.xlu0 %343
    %v345 = vsel %vm341, %v339, -inf
    %346 = vmax.xlane.f32.xlu0 %v345
    %v347 = vpop.xlane.xlu0 %346
    %v348 = vsub.f32 %v336, %v344
    %v349 = vsub.f32 %v339, %v347
    %v350 = vmul.f32 %v348, 1.442695
    %v351 = vpow.pop %v350
    %v352 = vmul.f32 %v349, 1.442695
    %v353 = vpow.pop %v352
    %v355 = vsel %vm341, %v351, 0
    %v358 = vsel %vm341, %v353, 0
    %360 = vmatpush.msra.mxu0 0.0
    %361 = vmatpush.msra.mxu0 0.0
    %362 = vmatpush.msra.mxu0 0.0
    %363 = vmatpush.msra.mxu0 0.0
    %364 = vmatpush.msra.mxu0 0.0
    %365 = vmatpush.msra.mxu0 0.0
    %366 = vmatpush.msra.mxu0 0.0
    %367 = vmatpush.msra.mxu0 0.0
    %368 = vmatpush.msra.mxu0 %v170
    %369 = vmatpush.msra.mxu0 %v169
    %370 = vmatpush.msra.mxu0 %v168
    %371 = vmatpush.msra.mxu0 %v167
    %372 = vmatpush.msra.mxu0 %v166
    %373 = vmatpush.msra.mxu0 %v165
    %374 = vmatpush.msra.mxu0 %v164
    %375 = vmatpush.msra.mxu0 %v163
    %376 = vmatmul.f32.gmra.mxu0 %v355
    %v377 = vpop.f32.mrf.mxu0
    %v378 = vadd.f32 0.0, %v377
    %379 = vmatmul.f32.gmra.mxu0 %v358
    %v380 = vpop.f32.mrf.mxu0
    %v381 = vadd.f32 0.0, %v380
    %382 = vdwg.mxu0
    %v383 = vrcp.pop %v378
    %v384 = vmul.f32 %v378, %v383
    %v385 = vsub.f32 1.0, %v384
    %v386 = vmul.f32 %v383, %v385
    %v387 = vadd.f32 %v383, %v386
    %vm388 = vweird.f32 %v378
    %vm389 = vweird.f32 %v383
    %vm390 = vmor %vm388, %vm389
    %v391 = vsel %vm390, %v383, %v387
    %v392 = vand.u32 2147483647, %v378
    %vm393 = vcmp.eq.f32.partialorder %v392, 8.507059e+37
    %v394 = vand.u32 %v378, 2147483648
    %v395 = vor.u32 1.1754944e-38, %v394
    %v396 = vsel %vm393, %v395, %v391
    %v397 = vmul.f32 %v351, %v396
    %v398 = vrcp.pop %v381
    %v399 = vmul.f32 %v381, %v398
    %v400 = vsub.f32 1.0, %v399
    %v401 = vmul.f32 %v398, %v400
    %v402 = vadd.f32 %v398, %v401
    %vm403 = vweird.f32 %v381
    %vm404 = vweird.f32 %v398
    %vm405 = vmor %vm403, %vm404
    %v406 = vsel %vm405, %v398, %v402
    %v407 = vand.u32 2147483647, %v381
    %vm408 = vcmp.eq.f32.partialorder %v407, 8.507059e+37
    %v409 = vand.u32 %v381, 2147483648
    %v410 = vor.u32 1.1754944e-38, %v409
    %v411 = vsel %vm408, %v410, %v406
    %v412 = vmul.f32 %v353, %v411
    %421 = vrot.lane.b32.xlu0 %v255, 64
    %v422 = vpop.permute.xlu0 %421
    %423 = vrot.lane.b32.xlu0 %v256, 64
    %v424 = vpop.permute.xlu0 %423
    %425 = vrot.lane.b32.xlu0 %v260, 64
    %v426 = vpop.permute.xlu0 %425
    %427 = vrot.lane.b32.xlu0 %v261, 64
    %v428 = vpop.permute.xlu0 %427
    %429 = vrot.lane.b32.xlu0 %v265, 64
    %v430 = vpop.permute.xlu0 %429
    %431 = vrot.lane.b32.xlu0 %v266, 64
    %v432 = vpop.permute.xlu0 %431
    %433 = vrot.lane.b32.xlu0 %v270, 64
    %v434 = vpop.permute.xlu0 %433
    %435 = vrot.lane.b32.xlu0 %v271, 64
    %v436 = vpop.permute.xlu0 %435
    %v446 = vsel %vm341, %v397, 0
    %v449 = vsel %vm341, %v412, 0
    %451 = vmatpush.msra.mxu0 0.0
    %452 = vmatpush.msra.mxu0 0.0
    %453 = vmatpush.msra.mxu0 0.0
    %454 = vmatpush.msra.mxu0 0.0
    %455 = vmatpush.msra.mxu0 0.0
    %456 = vmatpush.msra.mxu0 0.0
    %457 = vmatpush.msra.mxu0 0.0
    %458 = vmatpush.msra.mxu0 0.0
    %459 = vmatpush.msra.mxu0 %v436
    %460 = vmatpush.msra.mxu0 %v434
    %461 = vmatpush.msra.mxu0 %v432
    %462 = vmatpush.msra.mxu0 %v430
    %463 = vmatpush.msra.mxu0 %v428
    %464 = vmatpush.msra.mxu0 %v426
    %465 = vmatpush.msra.mxu0 %v424
    %466 = vmatpush.msra.mxu0 %v422
    %467 = vmatmul.f32.gmra.mxu0 %v446
    %v468 = vpop.f32.mrf.mxu0
    %v469 = vadd.f32 0.0, %v468
    %470 = vmatmul.f32.gmra.mxu0 %v449
    %v471 = vpop.f32.mrf.mxu0
    %v472 = vadd.f32 0.0, %v471
    %473 = vdwg.mxu0
    %474 = vmatpush.msra.mxu0 0.0
    %475 = vmatpush.msra.mxu0 0.0
    %476 = vmatpush.msra.mxu0 0.0
    %477 = vmatpush.msra.mxu0 0.0
    %478 = vmatpush.msra.mxu0 0.0
    %479 = vmatpush.msra.mxu0 0.0
    %480 = vmatpush.msra.mxu0 0.0
    %481 = vmatpush.msra.mxu0 0.0
    %482 = vmatpush.msra.mxu0 %v178
    %483 = vmatpush.msra.mxu0 %v177
    %484 = vmatpush.msra.mxu0 %v176
    %485 = vmatpush.msra.mxu0 %v175
    %486 = vmatpush.msra.mxu0 %v174
    %487 = vmatpush.msra.mxu0 %v173
    %488 = vmatpush.msra.mxu0 %v172
    %489 = vmatpush.msra.mxu0 %v171
    %490 = vmatmul.f32.gmra.mxu0 %v446
    %v491 = vpop.f32.mrf.mxu0
    %v492 = vadd.f32 0.0, %v491
    %493 = vmatmul.f32.gmra.mxu0 %v449
    %v494 = vpop.f32.mrf.mxu0
    %v495 = vadd.f32 0.0, %v494
    %496 = vdwg.mxu0
    %vm497 = vcmask 130048
    %498 = vst.msk [vmem:[#allocation12] sm:$0xff] %vm497, %v492
    %499 = vst.msk [vmem:[#allocation12 + $0x8] sm:$0xff] %vm497, %v495
    %v500 = vld [vmem:[#allocation6] sm:$0xff]
    %v501 = vld [vmem:[#allocation6 + $0x8] sm:$0xff]
    %v502 = vld [vmem:[#allocation6 + $0x10] sm:$0xff]
    %v503 = vld [vmem:[#allocation6 + $0x18] sm:$0xff]
    %v504 = vld [vmem:[%s6] sm:$0x1]
    %v506 = vperm.slane %v504, 0
    %v509 = vsel %vm187, %v469, 0
    %v512 = vsel %vm187, %v472, 0
    %514 = vmatpush.msra.mxu0 0.0
    %515 = vmatpush.msra.mxu0 0.0
    %516 = vmatpush.msra.mxu0 0.0
    %517 = vmatpush.msra.mxu0 0.0
    %518 = vmatpush.msra.mxu0 0.0
    %519 = vmatpush.msra.mxu0 0.0
    %520 = vmatpush.msra.mxu0 0.0
    %521 = vmatpush.msra.mxu0 0.0
    %522 = vmatpush.msra.mxu0 0.0
    %523 = vmatpush.msra.mxu0 0.0
    %524 = vmatpush.msra.mxu0 0.0
    %525 = vmatpush.msra.mxu0 0.0
    %526 = vmatpush.msra.mxu0 %v503
    %527 = vmatpush.msra.mxu0 %v502
    %528 = vmatpush.msra.mxu0 %v501
    %529 = vmatpush.msra.mxu0 %v500
    %530 = vmatmul.f32.gmra.mxu0 %v509
    %v531 = vpop.f32.mrf.mxu0
    %v532 = vadd.f32 %v506, %v531
    %533 = vmatmul.f32.gmra.mxu0 %v512
    %v534 = vpop.f32.mrf.mxu0
    %v535 = vadd.f32 %v506, %v534
    %536 = vdwg.mxu0
    %v537 = vadd.f32 %v159, %v532
    %v538 = vadd.f32 %v160, %v535
    %v539 = vsel %vm187, %v537, 0.0
    %540 = vadd.xlane.f32.xlu0 %v539
    %v541 = vpop.xlane.xlu0 %540
    %v542 = vsel %vm187, %v538, 0.0
    %543 = vadd.xlane.f32.xlu0 %v542
    %v544 = vpop.xlane.xlu0 %543
    %v545 = vrcp.pop 32.0
    %v546 = vmul.f32 32.0, %v545
    %v547 = vsub.f32 1.0, %v546
    %v548 = vmul.f32 %v545, %v547
    %v549 = vadd.f32 %v545, %v548
    %vm550 = vweird.f32 %v545
    %v551 = vsel %vm550, %v545, %v549
    %v552 = vmul.f32 %v541, %v551
    %v553 = vmul.f32 %v544, %v551
    %v554 = vsub.f32 %v537, %v552
    %v555 = vsub.f32 %v538, %v553
    %v556 = vmul.f32 %v554, %v554
    %v557 = vmul.f32 %v555, %v555
    %v558 = vsel %vm187, %v556, 0.0
    %559 = vadd.xlane.f32.xlu0 %v558
    %v560 = vpop.xlane.xlu0 %559
    %v561 = vsel %vm187, %v557, 0.0
    %562 = vadd.xlane.f32.xlu0 %v561
    %v563 = vpop.xlane.xlu0 %562
    %v564 = vmul.f32 %v560, %v551
    %v565 = vmul.f32 %v563, %v551
    %v566 = vadd.f32 %v564, 1e-05
    %v567 = vadd.f32 %v565, 1e-05
    %v568 = vrsqrt.pop %v566
    %v569 = vmul.f32 %v568, %v566
    %v570 = vmul.f32 %v569, %v568
    %v571 = vmul.f32 0.5, %v570
    %v572 = vsub.f32 1.5, %v571
    %v573 = vmul.f32 %v568, %v572
    %vm574 = vweird.f32 %v566
    %vm575 = vweird.f32 %v568
    %vm576 = vmor %vm574, %vm575
    %v577 = vsel %vm576, %v568, %v573
    %v578 = vrsqrt.pop %v567
    %v579 = vmul.f32 %v578, %v567
    %v580 = vmul.f32 %v579, %v578
    %v581 = vmul.f32 0.5, %v580
    %v582 = vsub.f32 1.5, %v581
    %v583 = vmul.f32 %v578, %v582
    %vm584 = vweird.f32 %v567
    %vm585 = vweird.f32 %v578
    %vm586 = vmor %vm584, %vm585
    %v587 = vsel %vm586, %v578, %v583
    %v588 = vmul.f32 %v554, %v577
    %v589 = vmul.f32 %v555, %v587
    %v590 = vld [vmem:[%s7] sm:$0x1]
    %v592 = vperm.slane %v590, 0
    %v594 = vmul.f32 %v588, %v592
    %v595 = vmul.f32 %v589, %v592
    %v596 = vld [vmem:[#allocation8] sm:$0x1]
    %v598 = vperm.slane %v596, 0
    %v600 = vadd.f32 %v594, %v598
    %v601 = vadd.f32 %v595, %v598
    %s602 = scalar_lea.vmem [#allocation3], 32
    %v603 = vld [vmem:[%s602] sm:$0xff]
    %v604 = vld [vmem:[%s602 + $0x8] sm:$0xff]
    %v605 = vld [vmem:[%s602 + $0x10] sm:$0xff]
    %v606 = vld [vmem:[%s602 + $0x18] sm:$0xff]
    %s607 = scalar_lea.vmem %s4, 1
    %v608 = vld [vmem:[%s607] sm:$0x1]
    %v610 = vperm.slane %v608, 0
    %v613 = vsel %vm187, %v600, 0
    %v616 = vsel %vm187, %v601, 0
    %618 = vmatpush.msra.mxu0 0.0
    %619 = vmatpush.msra.mxu0 0.0
    %620 = vmatpush.msra.mxu0 0.0
    %621 = vmatpush.msra.mxu0 0.0
    %622 = vmatpush.msra.mxu0 0.0
    %623 = vmatpush.msra.mxu0 0.0
    %624 = vmatpush.msra.mxu0 0.0
    %625 = vmatpush.msra.mxu0 0.0
    %626 = vmatpush.msra.mxu0 0.0
    %627 = vmatpush.msra.mxu0 0.0
    %628 = vmatpush.msra.mxu0 0.0
    %629 = vmatpush.msra.mxu0 0.0
    %630 = vmatpush.msra.mxu0 %v606
    %631 = vmatpush.msra.mxu0 %v605
    %632 = vmatpush.msra.mxu0 %v604
    %633 = vmatpush.msra.mxu0 %v603
    %634 = vmatmul.f32.gmra.mxu0 %v613
    %v635 = vpop.f32.mrf.mxu0
    %v636 = vadd.f32 %v610, %v635
    %637 = vmatmul.f32.gmra.mxu0 %v616
    %v638 = vpop.f32.mrf.mxu0
    %v639 = vadd.f32 %v610, %v638
    %640 = vdwg.mxu0
    %v641 = vld [vmem:[%s9] sm:$0x1]
    %v643 = vperm.slane %v641, 0
    %644 = vrot.lane.b32.xlu0 %v643, 32
    %v645 = vpop.permute.xlu0 %644
    %v647 = vmul.f32 %v636, %v645
    %v648 = vmul.f32 %v639, %v645
    %v649 = vld [vmem:[%s225] sm:$0x1]
    %v651 = vperm.slane %v649, 0
    %652 = vrot.lane.b32.xlu0 %v651, 32
    %v653 = vpop.permute.xlu0 %652
    %v655 = vmul.f32 %v636, %v653
    %v656 = vmul.f32 %v639, %v653
    %v657 = vld [vmem:[%s234] sm:$0x1]
    %v659 = vperm.slane %v657, 0
    %660 = vrot.lane.b32.xlu0 %v659, 32
    %v661 = vpop.permute.xlu0 %660
    %v663 = vmul.f32 %v636, %v661
    %v664 = vmul.f32 %v639, %v661
    %v665 = vld [vmem:[%s243] sm:$0x1]
    %v667 = vperm.slane %v665, 0
    %668 = vrot.lane.b32.xlu0 %v667, 32
    %v669 = vpop.permute.xlu0 %668
    %v671 = vmul.f32 %v636, %v669
    %v672 = vmul.f32 %v639, %v669
    %673 = vrot.lane.b32.xlu0 %v643, 64
    %v674 = vpop.permute.xlu0 %673
    %v676 = vmul.f32 %v636, %v674
    %v677 = vmul.f32 %v639, %v674
    %678 = vrot.lane.b32.xlu0 %v651, 64
    %v679 = vpop.permute.xlu0 %678
    %v681 = vmul.f32 %v636, %v679
    %v682 = vmul.f32 %v639, %v679
    %683 = vrot.lane.b32.xlu0 %v659, 64
    %v684 = vpop.permute.xlu0 %683
    %v686 = vmul.f32 %v636, %v684
    %v687 = vmul.f32 %v639, %v684
    %688 = vrot.lane.b32.xlu0 %v667, 64
    %v689 = vpop.permute.xlu0 %688
    %v691 = vmul.f32 %v636, %v689
    %v692 = vmul.f32 %v639, %v689
    %701 = vrot.lane.b32.xlu0 %v647, 96
    %v702 = vpop.permute.xlu0 %701
    %703 = vrot.lane.b32.xlu0 %v648, 96
    %v704 = vpop.permute.xlu0 %703
    %705 = vrot.lane.b32.xlu0 %v655, 96
    %v706 = vpop.permute.xlu0 %705
    %707 = vrot.lane.b32.xlu0 %v656, 96
    %v708 = vpop.permute.xlu0 %707
    %709 = vrot.lane.b32.xlu0 %v663, 96
    %v710 = vpop.permute.xlu0 %709
    %711 = vrot.lane.b32.xlu0 %v664, 96
    %v712 = vpop.permute.xlu0 %711
    %713 = vrot.lane.b32.xlu0 %v671, 96
    %v714 = vpop.permute.xlu0 %713
    %715 = vrot.lane.b32.xlu0 %v672, 96
    %v716 = vpop.permute.xlu0 %715
    %v718 = vsel %vm187, %v636, 0
    %v721 = vsel %vm187, %v639, 0
    %v723 = vsel %vm187, %v702, 0
    %v725 = vsel %vm187, %v704, 0
    %v727 = vsel %vm187, %v706, 0
    %v729 = vsel %vm187, %v708, 0
    %v731 = vsel %vm187, %v710, 0
    %v733 = vsel %vm187, %v712, 0
    %v735 = vsel %vm187, %v714, 0
    %v737 = vsel %vm187, %v716, 0
    %739 = vmatpush.xpose.msra.mxu0 0.0
    %740 = vmatpush.xpose.msra.mxu0 0.0
    %741 = vmatpush.xpose.msra.mxu0 0.0
    %742 = vmatpush.xpose.msra.mxu0 0.0
    %743 = vmatpush.xpose.msra.mxu0 0.0
    %744 = vmatpush.xpose.msra.mxu0 0.0
    %745 = vmatpush.xpose.msra.mxu0 0.0
    %746 = vmatpush.xpose.msra.mxu0 0.0
    %747 = vmatpush.xpose.msra.mxu0 %v737
    %748 = vmatpush.xpose.msra.mxu0 %v735
    %749 = vmatpush.xpose.msra.mxu0 %v733
    %750 = vmatpush.xpose.msra.mxu0 %v731
    %751 = vmatpush.xpose.msra.mxu0 %v729
    %752 = vmatpush.xpose.msra.mxu0 %v727
    %753 = vmatpush.xpose.msra.mxu0 %v725
    %754 = vmatpush.xpose.msra.mxu0 %v723
    %755 = vmatmul.f32.gmra.mxu0 %v718
    %v756 = vpop.f32.mrf.mxu0
    %v757 = vadd.f32 %v161, %v756
    %758 = vmatmul.f32.gmra.mxu0 %v721
    %v759 = vpop.f32.mrf.mxu0
    %v760 = vadd.f32 %v162, %v759
    %761 = vdwg.mxu0
    %v762 = vsel %vm341, %v757, -inf
    %763 = vmax.xlane.f32.xlu0 %v762
    %v764 = vpop.xlane.xlu0 %763
    %v765 = vsel %vm341, %v760, -inf
    %766 = vmax.xlane.f32.xlu0 %v765
    %v767 = vpop.xlane.xlu0 %766
    %v768 = vsub.f32 %v757, %v764
    %v769 = vsub.f32 %v760, %v767
    %v770 = vmul.f32 %v768, 1.442695
    %v771 = vpow.pop %v770
    %v772 = vmul.f32 %v769, 1.442695
    %v773 = vpow.pop %v772
    %v775 = vsel %vm341, %v771, 0
    %v778 = vsel %vm341, %v773, 0
    %780 = vmatpush.msra.mxu0 0.0
    %781 = vmatpush.msra.mxu0 0.0
    %782 = vmatpush.msra.mxu0 0.0
    %783 = vmatpush.msra.mxu0 0.0
    %784 = vmatpush.msra.mxu0 0.0
    %785 = vmatpush.msra.mxu0 0.0
    %786 = vmatpush.msra.mxu0 0.0
    %787 = vmatpush.msra.mxu0 0.0
    %788 = vmatpush.msra.mxu0 %v170
    %789 = vmatpush.msra.mxu0 %v169
    %790 = vmatpush.msra.mxu0 %v168
    %791 = vmatpush.msra.mxu0 %v167
    %792 = vmatpush.msra.mxu0 %v166
    %793 = vmatpush.msra.mxu0 %v165
    %794 = vmatpush.msra.mxu0 %v164
    %795 = vmatpush.msra.mxu0 %v163
    %796 = vmatmul.f32.gmra.mxu0 %v775
    %v797 = vpop.f32.mrf.mxu0
    %v798 = vadd.f32 0.0, %v797
    %799 = vmatmul.f32.gmra.mxu0 %v778
    %v800 = vpop.f32.mrf.mxu0
    %v801 = vadd.f32 0.0, %v800
    %802 = vdwg.mxu0
    %v803 = vrcp.pop %v798
    %v804 = vmul.f32 %v798, %v803
    %v805 = vsub.f32 1.0, %v804
    %v806 = vmul.f32 %v803, %v805
    %v807 = vadd.f32 %v803, %v806
    %vm808 = vweird.f32 %v798
    %vm809 = vweird.f32 %v803
    %vm810 = vmor %vm808, %vm809
    %v811 = vsel %vm810, %v803, %v807
    %v812 = vand.u32 2147483647, %v798
    %vm813 = vcmp.eq.f32.partialorder %v812, 8.507059e+37
    %v814 = vand.u32 %v798, 2147483648
    %v815 = vor.u32 1.1754944e-38, %v814
    %v816 = vsel %vm813, %v815, %v811
    %v817 = vmul.f32 %v771, %v816
    %v818 = vrcp.pop %v801
    %v819 = vmul.f32 %v801, %v818
    %v820 = vsub.f32 1.0, %v819
    %v821 = vmul.f32 %v818, %v820
    %v822 = vadd.f32 %v818, %v821
    %vm823 = vweird.f32 %v801
    %vm824 = vweird.f32 %v818
    %vm825 = vmor %vm823, %vm824
    %v826 = vsel %vm825, %v818, %v822
    %v827 = vand.u32 2147483647, %v801
    %vm828 = vcmp.eq.f32.partialorder %v827, 8.507059e+37
    %v829 = vand.u32 %v801, 2147483648
    %v830 = vor.u32 1.1754944e-38, %v829
    %v831 = vsel %vm828, %v830, %v826
    %v832 = vmul.f32 %v773, %v831
    %841 = vrot.lane.b32.xlu0 %v676, 64
    %v842 = vpop.permute.xlu0 %841
    %843 = vrot.lane.b32.xlu0 %v677, 64
    %v844 = vpop.permute.xlu0 %843
    %845 = vrot.lane.b32.xlu0 %v681, 64
    %v846 = vpop.permute.xlu0 %845
    %847 = vrot.lane.b32.xlu0 %v682, 64
    %v848 = vpop.permute.xlu0 %847
    %849 = vrot.lane.b32.xlu0 %v686, 64
    %v850 = vpop.permute.xlu0 %849
    %851 = vrot.lane.b32.xlu0 %v687, 64
    %v852 = vpop.permute.xlu0 %851
    %853 = vrot.lane.b32.xlu0 %v691, 64
    %v854 = vpop.permute.xlu0 %853
    %855 = vrot.lane.b32.xlu0 %v692, 64
    %v856 = vpop.permute.xlu0 %855
    %v866 = vsel %vm341, %v817, 0
    %v869 = vsel %vm341, %v832, 0
    %871 = vmatpush.msra.mxu0 0.0
    %872 = vmatpush.msra.mxu0 0.0
    %873 = vmatpush.msra.mxu0 0.0
    %874 = vmatpush.msra.mxu0 0.0
    %875 = vmatpush.msra.mxu0 0.0
    %876 = vmatpush.msra.mxu0 0.0
    %877 = vmatpush.msra.mxu0 0.0
    %878 = vmatpush.msra.mxu0 0.0
    %879 = vmatpush.msra.mxu0 %v856
    %880 = vmatpush.msra.mxu0 %v854
    %881 = vmatpush.msra.mxu0 %v852
    %882 = vmatpush.msra.mxu0 %v850
    %883 = vmatpush.msra.mxu0 %v848
    %884 = vmatpush.msra.mxu0 %v846
    %885 = vmatpush.msra.mxu0 %v844
    %886 = vmatpush.msra.mxu0 %v842
    %887 = vmatmul.f32.gmra.mxu0 %v866
    %v888 = vpop.f32.mrf.mxu0
    %v889 = vadd.f32 0.0, %v888
    %890 = vmatmul.f32.gmra.mxu0 %v869
    %v891 = vpop.f32.mrf.mxu0
    %v892 = vadd.f32 0.0, %v891
    %893 = vdwg.mxu0
    %894 = vmatpush.msra.mxu0 0.0
    %895 = vmatpush.msra.mxu0 0.0
    %896 = vmatpush.msra.mxu0 0.0
    %897 = vmatpush.msra.mxu0 0.0
    %898 = vmatpush.msra.mxu0 0.0
    %899 = vmatpush.msra.mxu0 0.0
    %900 = vmatpush.msra.mxu0 0.0
    %901 = vmatpush.msra.mxu0 0.0
    %902 = vmatpush.msra.mxu0 %v178
    %903 = vmatpush.msra.mxu0 %v177
    %904 = vmatpush.msra.mxu0 %v176
    %905 = vmatpush.msra.mxu0 %v175
    %906 = vmatpush.msra.mxu0 %v174
    %907 = vmatpush.msra.mxu0 %v173
    %908 = vmatpush.msra.mxu0 %v172
    %909 = vmatpush.msra.mxu0 %v171
    %910 = vmatmul.f32.gmra.mxu0 %v866
    %v911 = vpop.f32.mrf.mxu0
    %v912 = vadd.f32 0.0, %v911
    %913 = vmatmul.f32.gmra.mxu0 %v869
    %v914 = vpop.f32.mrf.mxu0
    %v915 = vadd.f32 0.0, %v914
    %916 = vdwg.mxu0
    %s917 = scalar_lea.vmem [#allocation12], 16
    %918 = vst.msk [vmem:[%s917] sm:$0xff] %vm497, %v912
    %919 = vst.msk [vmem:[%s917 + $0x8] sm:$0xff] %vm497, %v915
    %s920 = scalar_lea.vmem [#allocation6], 32
    %v921 = vld [vmem:[%s920] sm:$0xff]
    %v922 = vld [vmem:[%s920 + $0x8] sm:$0xff]
    %v923 = vld [vmem:[%s920 + $0x10] sm:$0xff]
    %v924 = vld [vmem:[%s920 + $0x18] sm:$0xff]
    %s925 = scalar_lea.vmem %s6, 1
    %v926 = vld [vmem:[%s925] sm:$0x1]
    %v928 = vperm.slane %v926, 0
    %v931 = vsel %vm187, %v889, 0
    %v934 = vsel %vm187, %v892, 0
    %936 = vmatpush.msra.mxu0 0.0
    %937 = vmatpush.msra.mxu0 0.0
    %938 = vmatpush.msra.mxu0 0.0
    %939 = vmatpush.msra.mxu0 0.0
    %940 = vmatpush.msra.mxu0 0.0
    %941 = vmatpush.msra.mxu0 0.0
    %942 = vmatpush.msra.mxu0 0.0
    %943 = vmatpush.msra.mxu0 0.0
    %944 = vmatpush.msra.mxu0 0.0
    %945 = vmatpush.msra.mxu0 0.0
    %946 = vmatpush.msra.mxu0 0.0
    %947 = vmatpush.msra.mxu0 0.0
    %948 = vmatpush.msra.mxu0 %v924
    %949 = vmatpush.msra.mxu0 %v923
    %950 = vmatpush.msra.mxu0 %v922
    %951 = vmatpush.msra.mxu0 %v921
    %952 = vmatmul.f32.gmra.mxu0 %v931
    %v953 = vpop.f32.mrf.mxu0
    %v954 = vadd.f32 %v928, %v953
    %955 = vmatmul.f32.gmra.mxu0 %v934
    %v956 = vpop.f32.mrf.mxu0
    %v957 = vadd.f32 %v928, %v956
    %958 = vdwg.mxu0
    %v959 = vadd.f32 %v600, %v954
    %v960 = vadd.f32 %v601, %v957
    %v961 = vsel %vm187, %v959, 0.0
    %962 = vadd.xlane.f32.xlu0 %v961
    %v963 = vpop.xlane.xlu0 %962
    %v964 = vsel %vm187, %v960, 0.0
    %965 = vadd.xlane.f32.xlu0 %v964
    %v966 = vpop.xlane.xlu0 %965
    %v967 = vmul.f32 %v963, %v551
    %v968 = vmul.f32 %v966, %v551
    %v969 = vsub.f32 %v959, %v967
    %v970 = vsub.f32 %v960, %v968
    %v971 = vmul.f32 %v969, %v969
    %v972 = vmul.f32 %v970, %v970
    %v973 = vsel %vm187, %v971, 0.0
    %974 = vadd.xlane.f32.xlu0 %v973
    %v975 = vpop.xlane.xlu0 %974
    %v976 = vsel %vm187, %v972, 0.0
    %977 = vadd.xlane.f32.xlu0 %v976
    %v978 = vpop.xlane.xlu0 %977
    %v979 = vmul.f32 %v975, %v551
    %v980 = vmul.f32 %v978, %v551
    %v981 = vadd.f32 %v979, 1e-05
    %v982 = vadd.f32 %v980, 1e-05
    %v983 = vrsqrt.pop %v981
    %v984 = vmul.f32 %v983, %v981
    %v985 = vmul.f32 %v984, %v983
    %v986 = vmul.f32 0.5, %v985
    %v987 = vsub.f32 1.5, %v986
    %v988 = vmul.f32 %v983, %v987
    %vm989 = vweird.f32 %v981
    %vm990 = vweird.f32 %v983
    %vm991 = vmor %vm989, %vm990
    %v992 = vsel %vm991, %v983, %v988
    %v993 = vrsqrt.pop %v982
    %v994 = vmul.f32 %v993, %v982
    %v995 = vmul.f32 %v994, %v993
    %v996 = vmul.f32 0.5, %v995
    %v997 = vsub.f32 1.5, %v996
    %v998 = vmul.f32 %v993, %v997
    %vm999 = vweird.f32 %v982
    %vm1000 = vweird.f32 %v993
    %vm1001 = vmor %vm999, %vm1000
    %v1002 = vsel %vm1001, %v993, %v998
    %v1003 = vmul.f32 %v969, %v992
    %v1004 = vmul.f32 %v970, %v1002
    %s1005 = scalar_lea.vmem %s7, 1
    %v1006 = vld [vmem:[%s1005] sm:$0x1]
    %v1008 = vperm.slane %v1006, 0
    %v1010 = vmul.f32 %v1003, %v1008
    %v1011 = vmul.f32 %v1004, %v1008
    %s1012 = scalar_lea.vmem [#allocation8], 1
    %v1013 = vld [vmem:[%s1012] sm:$0x1]
    %v1015 = vperm.slane %v1013, 0
    %v1017 = vadd.f32 %v1010, %v1015
    %v1018 = vadd.f32 %v1011, %v1015
    %s1019 = scalar_lea.vmem [#allocation3], 64
    %v1020 = vld [vmem:[%s1019] sm:$0xff]
    %v1021 = vld [vmem:[%s1019 + $0x8] sm:$0xff]
    %v1022 = vld [vmem:[%s1019 + $0x10] sm:$0xff]
    %v1023 = vld [vmem:[%s1019 + $0x18] sm:$0xff]
    %s1024 = scalar_lea.vmem %s4, 2
    %v1025 = vld [vmem:[%s1024] sm:$0x1]
    %v1027 = vperm.slane %v1025, 0
    %v1030 = vsel %vm187, %v1017, 0
    %v1033 = vsel %vm187, %v1018, 0
    %1035 = vmatpush.msra.mxu0 0.0
    %1036 = vmatpush.msra.mxu0 0.0
    %1037 = vmatpush.msra.mxu0 0.0
    %1038 = vmatpush.msra.mxu0 0.0
    %1039 = vmatpush.msra.mxu0 0.0
    %1040 = vmatpush.msra.mxu0 0.0
    %1041 = vmatpush.msra.mxu0 0.0
    %1042 = vmatpush.msra.mxu0 0.0
    %1043 = vmatpush.msra.mxu0 0.0
    %1044 = vmatpush.msra.mxu0 0.0
    %1045 = vmatpush.msra.mxu0 0.0
    %1046 = vmatpush.msra.mxu0 0.0
    %1047 = vmatpush.msra.mxu0 %v1023
    %1048 = vmatpush.msra.mxu0 %v1022
    %1049 = vmatpush.msra.mxu0 %v1021
    %1050 = vmatpush.msra.mxu0 %v1020
    %1051 = vmatmul.f32.gmra.mxu0 %v1030
    %v1052 = vpop.f32.mrf.mxu0
    %v1053 = vadd.f32 %v1027, %v1052
    %1054 = vmatmul.f32.gmra.mxu0 %v1033
    %v1055 = vpop.f32.mrf.mxu0
    %v1056 = vadd.f32 %v1027, %v1055
    %1057 = vdwg.mxu0
    %v1058 = vld [vmem:[%s9] sm:$0x1]
    %v1060 = vperm.slane %v1058, 0
    %1061 = vrot.lane.b32.xlu0 %v1060, 32
    %v1062 = vpop.permute.xlu0 %1061
    %v1064 = vmul.f32 %v1053, %v1062
    %v1065 = vmul.f32 %v1056, %v1062
    %v1066 = vld [vmem:[%s225] sm:$0x1]
    %v1068 = vperm.slane %v1066, 0
    %1069 = vrot.lane.b32.xlu0 %v1068, 32
    %v1070 = vpop.permute.xlu0 %1069
    %v1072 = vmul.f32 %v1053, %v1070
    %v1073 = vmul.f32 %v1056, %v1070
    %v1074 = vld [vmem:[%s234] sm:$0x1]
    %v1076 = vperm.slane %v1074, 0
    %1077 = vrot.lane.b32.xlu0 %v1076, 32
    %v1078 = vpop.permute.xlu0 %1077
    %v1080 = vmul.f32 %v1053, %v1078
    %v1081 = vmul.f32 %v1056, %v1078
    %v1082 = vld [vmem:[%s243] sm:$0x1]
    %v1084 = vperm.slane %v1082, 0
    %1085 = vrot.lane.b32.xlu0 %v1084, 32
    %v1086 = vpop.permute.xlu0 %1085
    %v1088 = vmul.f32 %v1053, %v1086
    %v1089 = vmul.f32 %v1056, %v1086
    %1090 = vrot.lane.b32.xlu0 %v1060, 64
    %v1091 = vpop.permute.xlu0 %1090
    %v1093 = vmul.f32 %v1053, %v1091
    %v1094 = vmul.f32 %v1056, %v1091
    %1095 = vrot.lane.b32.xlu0 %v1068, 64
    %v1096 = vpop.permute.xlu0 %1095
    %v1098 = vmul.f32 %v1053, %v1096
    %v1099 = vmul.f32 %v1056, %v1096
    %1100 = vrot.lane.b32.xlu0 %v1076, 64
    %v1101 = vpop.permute.xlu0 %1100
    %v1103 = vmul.f32 %v1053, %v1101
    %v1104 = vmul.f32 %v1056, %v1101
    %1105 = vrot.lane.b32.xlu0 %v1084, 64
    %v1106 = vpop.permute.xlu0 %1105
    %v1108 = vmul.f32 %v1053, %v1106
    %v1109 = vmul.f32 %v1056, %v1106
    %1118 = vrot.lane.b32.xlu0 %v1064, 96
    %v1119 = vpop.permute.xlu0 %1118
    %1120 = vrot.lane.b32.xlu0 %v1065, 96
    %v1121 = vpop.permute.xlu0 %1120
    %1122 = vrot.lane.b32.xlu0 %v1072, 96
    %v1123 = vpop.permute.xlu0 %1122
    %1124 = vrot.lane.b32.xlu0 %v1073, 96
    %v1125 = vpop.permute.xlu0 %1124
    %1126 = vrot.lane.b32.xlu0 %v1080, 96
    %v1127 = vpop.permute.xlu0 %1126
    %1128 = vrot.lane.b32.xlu0 %v1081, 96
    %v1129 = vpop.permute.xlu0 %1128
    %1130 = vrot.lane.b32.xlu0 %v1088, 96
    %v1131 = vpop.permute.xlu0 %1130
    %1132 = vrot.lane.b32.xlu0 %v1089, 96
    %v1133 = vpop.permute.xlu0 %1132
    %v1135 = vsel %vm187, %v1053, 0
    %v1138 = vsel %vm187, %v1056, 0
    %v1140 = vsel %vm187, %v1119, 0
    %v1142 = vsel %vm187, %v1121, 0
    %v1144 = vsel %vm187, %v1123, 0
    %v1146 = vsel %vm187, %v1125, 0
    %v1148 = vsel %vm187, %v1127, 0
    %v1150 = vsel %vm187, %v1129, 0
    %v1152 = vsel %vm187, %v1131, 0
    %v1154 = vsel %vm187, %v1133, 0
    %1156 = vmatpush.xpose.msra.mxu0 0.0
    %1157 = vmatpush.xpose.msra.mxu0 0.0
    %1158 = vmatpush.xpose.msra.mxu0 0.0
    %1159 = vmatpush.xpose.msra.mxu0 0.0
    %1160 = vmatpush.xpose.msra.mxu0 0.0
    %1161 = vmatpush.xpose.msra.mxu0 0.0
    %1162 = vmatpush.xpose.msra.mxu0 0.0
    %1163 = vmatpush.xpose.msra.mxu0 0.0
    %1164 = vmatpush.xpose.msra.mxu0 %v1154
    %1165 = vmatpush.xpose.msra.mxu0 %v1152
    %1166 = vmatpush.xpose.msra.mxu0 %v1150
    %1167 = vmatpush.xpose.msra.mxu0 %v1148
    %1168 = vmatpush.xpose.msra.mxu0 %v1146
    %1169 = vmatpush.xpose.msra.mxu0 %v1144
    %1170 = vmatpush.xpose.msra.mxu0 %v1142
    %1171 = vmatpush.xpose.msra.mxu0 %v1140
    %1172 = vmatmul.f32.gmra.mxu0 %v1135
    %v1173 = vpop.f32.mrf.mxu0
    %v1174 = vadd.f32 %v161, %v1173
    %1175 = vmatmul.f32.gmra.mxu0 %v1138
    %v1176 = vpop.f32.mrf.mxu0
    %v1177 = vadd.f32 %v162, %v1176
    %1178 = vdwg.mxu0
    %v1179 = vsel %vm341, %v1174, -inf
    %1180 = vmax.xlane.f32.xlu0 %v1179
    %v1181 = vpop.xlane.xlu0 %1180
    %v1182 = vsel %vm341, %v1177, -inf
    %1183 = vmax.xlane.f32.xlu0 %v1182
    %v1184 = vpop.xlane.xlu0 %1183
    %v1185 = vsub.f32 %v1174, %v1181
    %v1186 = vsub.f32 %v1177, %v1184
    %v1187 = vmul.f32 %v1185, 1.442695
    %v1188 = vpow.pop %v1187
    %v1189 = vmul.f32 %v1186, 1.442695
    %v1190 = vpow.pop %v1189
    %v1192 = vsel %vm341, %v1188, 0
    %v1195 = vsel %vm341, %v1190, 0
    %1197 = vmatpush.msra.mxu0 0.0
    %1198 = vmatpush.msra.mxu0 0.0
    %1199 = vmatpush.msra.mxu0 0.0
    %1200 = vmatpush.msra.mxu0 0.0
    %1201 = vmatpush.msra.mxu0 0.0
    %1202 = vmatpush.msra.mxu0 0.0
    %1203 = vmatpush.msra.mxu0 0.0
    %1204 = vmatpush.msra.mxu0 0.0
    %1205 = vmatpush.msra.mxu0 %v170
    %1206 = vmatpush.msra.mxu0 %v169
    %1207 = vmatpush.msra.mxu0 %v168
    %1208 = vmatpush.msra.mxu0 %v167
    %1209 = vmatpush.msra.mxu0 %v166
    %1210 = vmatpush.msra.mxu0 %v165
    %1211 = vmatpush.msra.mxu0 %v164
    %1212 = vmatpush.msra.mxu0 %v163
    %1213 = vmatmul.f32.gmra.mxu0 %v1192
    %v1214 = vpop.f32.mrf.mxu0
    %v1215 = vadd.f32 0.0, %v1214
    %1216 = vmatmul.f32.gmra.mxu0 %v1195
    %v1217 = vpop.f32.mrf.mxu0
    %v1218 = vadd.f32 0.0, %v1217
    %1219 = vdwg.mxu0
    %v1220 = vrcp.pop %v1215
    %v1221 = vmul.f32 %v1215, %v1220
    %v1222 = vsub.f32 1.0, %v1221
    %v1223 = vmul.f32 %v1220, %v1222
    %v1224 = vadd.f32 %v1220, %v1223
    %vm1225 = vweird.f32 %v1215
    %vm1226 = vweird.f32 %v1220
    %vm1227 = vmor %vm1225, %vm1226
    %v1228 = vsel %vm1227, %v1220, %v1224
    %v1229 = vand.u32 2147483647, %v1215
    %vm1230 = vcmp.eq.f32.partialorder %v1229, 8.507059e+37
    %v1231 = vand.u32 %v1215, 2147483648
    %v1232 = vor.u32 1.1754944e-38, %v1231
    %v1233 = vsel %vm1230, %v1232, %v1228
    %v1234 = vmul.f32 %v1188, %v1233
    %v1235 = vrcp.pop %v1218
    %v1236 = vmul.f32 %v1218, %v1235
    %v1237 = vsub.f32 1.0, %v1236
    %v1238 = vmul.f32 %v1235, %v1237
    %v1239 = vadd.f32 %v1235, %v1238
    %vm1240 = vweird.f32 %v1218
    %vm1241 = vweird.f32 %v1235
    %vm1242 = vmor %vm1240, %vm1241
    %v1243 = vsel %vm1242, %v1235, %v1239
    %v1244 = vand.u32 2147483647, %v1218
    %vm1245 = vcmp.eq.f32.partialorder %v1244, 8.507059e+37
    %v1246 = vand.u32 %v1218, 2147483648
    %v1247 = vor.u32 1.1754944e-38, %v1246
    %v1248 = vsel %vm1245, %v1247, %v1243
    %v1249 = vmul.f32 %v1190, %v1248
    %1258 = vrot.lane.b32.xlu0 %v1093, 64
    %v1259 = vpop.permute.xlu0 %1258
    %1260 = vrot.lane.b32.xlu0 %v1094, 64
    %v1261 = vpop.permute.xlu0 %1260
    %1262 = vrot.lane.b32.xlu0 %v1098, 64
    %v1263 = vpop.permute.xlu0 %1262
    %1264 = vrot.lane.b32.xlu0 %v1099, 64
    %v1265 = vpop.permute.xlu0 %1264
    %1266 = vrot.lane.b32.xlu0 %v1103, 64
    %v1267 = vpop.permute.xlu0 %1266
    %1268 = vrot.lane.b32.xlu0 %v1104, 64
    %v1269 = vpop.permute.xlu0 %1268
    %1270 = vrot.lane.b32.xlu0 %v1108, 64
    %v1271 = vpop.permute.xlu0 %1270
    %1272 = vrot.lane.b32.xlu0 %v1109, 64
    %v1273 = vpop.permute.xlu0 %1272
    %v1283 = vsel %vm341, %v1234, 0
    %v1286 = vsel %vm341, %v1249, 0
    %1288 = vmatpush.msra.mxu0 0.0
    %1289 = vmatpush.msra.mxu0 0.0
    %1290 = vmatpush.msra.mxu0 0.0
    %1291 = vmatpush.msra.mxu0 0.0
    %1292 = vmatpush.msra.mxu0 0.0
    %1293 = vmatpush.msra.mxu0 0.0
    %1294 = vmatpush.msra.mxu0 0.0
    %1295 = vmatpush.msra.mxu0 0.0
    %1296 = vmatpush.msra.mxu0 %v1273
    %1297 = vmatpush.msra.mxu0 %v1271
    %1298 = vmatpush.msra.mxu0 %v1269
    %1299 = vmatpush.msra.mxu0 %v1267
    %1300 = vmatpush.msra.mxu0 %v1265
    %1301 = vmatpush.msra.mxu0 %v1263
    %1302 = vmatpush.msra.mxu0 %v1261
    %1303 = vmatpush.msra.mxu0 %v1259
    %1304 = vmatmul.f32.gmra.mxu0 %v1283
    %v1305 = vpop.f32.mrf.mxu0
    %v1306 = vadd.f32 0.0, %v1305
    %1307 = vmatmul.f32.gmra.mxu0 %v1286
    %v1308 = vpop.f32.mrf.mxu0
    %v1309 = vadd.f32 0.0, %v1308
    %1310 = vdwg.mxu0
    %1311 = vmatpush.msra.mxu0 0.0
    %1312 = vmatpush.msra.mxu0 0.0
    %1313 = vmatpush.msra.mxu0 0.0
    %1314 = vmatpush.msra.mxu0 0.0
    %1315 = vmatpush.msra.mxu0 0.0
    %1316 = vmatpush.msra.mxu0 0.0
    %1317 = vmatpush.msra.mxu0 0.0
    %1318 = vmatpush.msra.mxu0 0.0
    %1319 = vmatpush.msra.mxu0 %v178
    %1320 = vmatpush.msra.mxu0 %v177
    %1321 = vmatpush.msra.mxu0 %v176
    %1322 = vmatpush.msra.mxu0 %v175
    %1323 = vmatpush.msra.mxu0 %v174
    %1324 = vmatpush.msra.mxu0 %v173
    %1325 = vmatpush.msra.mxu0 %v172
    %1326 = vmatpush.msra.mxu0 %v171
    %1327 = vmatmul.f32.gmra.mxu0 %v1283
    %v1328 = vpop.f32.mrf.mxu0
    %v1329 = vadd.f32 0.0, %v1328
    %1330 = vmatmul.f32.gmra.mxu0 %v1286
    %v1331 = vpop.f32.mrf.mxu0
    %v1332 = vadd.f32 0.0, %v1331
    %1333 = vdwg.mxu0
    %s1334 = scalar_lea.vmem [#allocation12], 32
    %1335 = vst.msk [vmem:[%s1334] sm:$0xff] %vm497, %v1329
    %1336 = vst.msk [vmem:[%s1334 + $0x8] sm:$0xff] %vm497, %v1332
    %s1337 = scalar_lea.vmem [#allocation6], 64
    %v1338 = vld [vmem:[%s1337] sm:$0xff]
    %v1339 = vld [vmem:[%s1337 + $0x8] sm:$0xff]
    %v1340 = vld [vmem:[%s1337 + $0x10] sm:$0xff]
    %v1341 = vld [vmem:[%s1337 + $0x18] sm:$0xff]
    %s1342 = scalar_lea.vmem %s6, 2
    %v1343 = vld [vmem:[%s1342] sm:$0x1]
    %v1345 = vperm.slane %v1343, 0
    %v1348 = vsel %vm187, %v1306, 0
    %v1351 = vsel %vm187, %v1309, 0
    %1353 = vmatpush.msra.mxu0 0.0
    %1354 = vmatpush.msra.mxu0 0.0
    %1355 = vmatpush.msra.mxu0 0.0
    %1356 = vmatpush.msra.mxu0 0.0
    %1357 = vmatpush.msra.mxu0 0.0
    %1358 = vmatpush.msra.mxu0 0.0
    %1359 = vmatpush.msra.mxu0 0.0
    %1360 = vmatpush.msra.mxu0 0.0
    %1361 = vmatpush.msra.mxu0 0.0
    %1362 = vmatpush.msra.mxu0 0.0
    %1363 = vmatpush.msra.mxu0 0.0
    %1364 = vmatpush.msra.mxu0 0.0
    %1365 = vmatpush.msra.mxu0 %v1341
    %1366 = vmatpush.msra.mxu0 %v1340
    %1367 = vmatpush.msra.mxu0 %v1339
    %1368 = vmatpush.msra.mxu0 %v1338
    %1369 = vmatmul.f32.gmra.mxu0 %v1348
    %v1370 = vpop.f32.mrf.mxu0
    %v1371 = vadd.f32 %v1345, %v1370
    %1372 = vmatmul.f32.gmra.mxu0 %v1351
    %v1373 = vpop.f32.mrf.mxu0
    %v1374 = vadd.f32 %v1345, %v1373
    %1375 = vdwg.mxu0
    %v1376 = vadd.f32 %v1017, %v1371
    %v1377 = vadd.f32 %v1018, %v1374
    %v1378 = vsel %vm187, %v1376, 0.0
    %1379 = vadd.xlane.f32.xlu0 %v1378
    %v1380 = vpop.xlane.xlu0 %1379
    %v1381 = vsel %vm187, %v1377, 0.0
    %1382 = vadd.xlane.f32.xlu0 %v1381
    %v1383 = vpop.xlane.xlu0 %1382
    %v1384 = vmul.f32 %v1380, %v551
    %v1385 = vmul.f32 %v1383, %v551
    %v1386 = vsub.f32 %v1376, %v1384
    %v1387 = vsub.f32 %v1377, %v1385
    %v1388 = vmul.f32 %v1386, %v1386
    %v1389 = vmul.f32 %v1387, %v1387
    %v1390 = vsel %vm187, %v1388, 0.0
    %1391 = vadd.xlane.f32.xlu0 %v1390
    %v1392 = vpop.xlane.xlu0 %1391
    %v1393 = vsel %vm187, %v1389, 0.0
    %1394 = vadd.xlane.f32.xlu0 %v1393
    %v1395 = vpop.xlane.xlu0 %1394
    %v1396 = vmul.f32 %v1392, %v551
    %v1397 = vmul.f32 %v1395, %v551
    %v1398 = vadd.f32 %v1396, 1e-05
    %v1399 = vadd.f32 %v1397, 1e-05
    %v1400 = vrsqrt.pop %v1398
    %v1401 = vmul.f32 %v1400, %v1398
    %v1402 = vmul.f32 %v1401, %v1400
    %v1403 = vmul.f32 0.5, %v1402
    %v1404 = vsub.f32 1.5, %v1403
    %v1405 = vmul.f32 %v1400, %v1404
    %vm1406 = vweird.f32 %v1398
    %vm1407 = vweird.f32 %v1400
    %vm1408 = vmor %vm1406, %vm1407
    %v1409 = vsel %vm1408, %v1400, %v1405
    %v1410 = vrsqrt.pop %v1399
    %v1411 = vmul.f32 %v1410, %v1399
    %v1412 = vmul.f32 %v1411, %v1410
    %v1413 = vmul.f32 0.5, %v1412
    %v1414 = vsub.f32 1.5, %v1413
    %v1415 = vmul.f32 %v1410, %v1414
    %vm1416 = vweird.f32 %v1399
    %vm1417 = vweird.f32 %v1410
    %vm1418 = vmor %vm1416, %vm1417
    %v1419 = vsel %vm1418, %v1410, %v1415
    %v1420 = vmul.f32 %v1386, %v1409
    %v1421 = vmul.f32 %v1387, %v1419
    %s1422 = scalar_lea.vmem %s7, 2
    %v1423 = vld [vmem:[%s1422] sm:$0x1]
    %v1425 = vperm.slane %v1423, 0
    %v1427 = vmul.f32 %v1420, %v1425
    %v1428 = vmul.f32 %v1421, %v1425
    %s1429 = scalar_lea.vmem [#allocation8], 2
    %v1430 = vld [vmem:[%s1429] sm:$0x1]
    %v1432 = vperm.slane %v1430, 0
    %v1434 = vadd.f32 %v1427, %v1432
    %v1435 = vadd.f32 %v1428, %v1432
    %v1436 = vld [vmem:[#allocation11] sm:$0xff]
    %v1437 = vld [vmem:[#allocation11 + $0x8] sm:$0xff]
    %v1438 = vld [vmem:[#allocation11 + $0x10] sm:$0xff]
    %v1439 = vld [vmem:[#allocation11 + $0x18] sm:$0xff]
    %s1440 = scalar_lea.vmem [#allocation11], 32
    %v1441 = vld [vmem:[%s1440] sm:$0xff]
    %v1442 = vld [vmem:[%s1440 + $0x8] sm:$0xff]
    %v1443 = vld [vmem:[%s1440 + $0x10] sm:$0xff]
    %v1444 = vld [vmem:[%s1440 + $0x18] sm:$0xff]
    %v1447 = vrot.slane %v1434, 1
    %vm1448 = vcmask 1041409
    %v1449 = vsel %vm1448, %v1435, %v1447
    %v1450 = vsel %vm187, %v1449, 0
    %1452 = vmatpush.msra.mxu0 0.0
    %1453 = vmatpush.msra.mxu0 0.0
    %1454 = vmatpush.msra.mxu0 0.0
    %1455 = vmatpush.msra.mxu0 0.0
    %1456 = vmatpush.msra.mxu0 0.0
    %1457 = vmatpush.msra.mxu0 0.0
    %1458 = vmatpush.msra.mxu0 0.0
    %1459 = vmatpush.msra.mxu0 0.0
    %1460 = vmatpush.msra.mxu0 0.0
    %1461 = vmatpush.msra.mxu0 0.0
    %1462 = vmatpush.msra.mxu0 0.0
    %1463 = vmatpush.msra.mxu0 0.0
    %1464 = vmatpush.msra.mxu0 %v1444
    %1465 = vmatpush.msra.mxu0 %v1443
    %1466 = vmatpush.msra.mxu0 %v1442
    %1467 = vmatpush.msra.mxu0 %v1441
    %1468 = vmatmul.f32.gmra.mxu0 %v1450
    %v1469 = vpop.f32.mrf.mxu0
    %v1470 = vadd.f32 0.0, %v1469
    %1471 = vdwg.mxu0
    %v1472 = vrot.slane %v1435, 7
    %v1473 = vsel %vm1448, %v1472, %v1434
    %v1474 = vsel %vm187, %v1473, 0
    %1476 = vmatpush.msra.mxu0 0.0
    %1477 = vmatpush.msra.mxu0 0.0
    %1478 = vmatpush.msra.mxu0 0.0
    %1479 = vmatpush.msra.mxu0 0.0
    %1480 = vmatpush.msra.mxu0 0.0
    %1481 = vmatpush.msra.mxu0 0.0
    %1482 = vmatpush.msra.mxu0 0.0
    %1483 = vmatpush.msra.mxu0 0.0
    %1484 = vmatpush.msra.mxu0 0.0
    %1485 = vmatpush.msra.mxu0 0.0
    %1486 = vmatpush.msra.mxu0 0.0
    %1487 = vmatpush.msra.mxu0 0.0
    %1488 = vmatpush.msra.mxu0 %v1439
    %1489 = vmatpush.msra.mxu0 %v1438
    %1490 = vmatpush.msra.mxu0 %v1437
    %1491 = vmatpush.msra.mxu0 %v1436
    %1492 = vmatmul.f32.gmra.mxu0 %v1474
    %v1493 = vpop.f32.mrf.mxu0
    %v1494 = vadd.f32 %v1470, %v1493
    %1495 = vdwg.mxu0
    %s1496 = scalar_lea.vmem [#allocation11], 64
    %v1497 = vld [vmem:[%s1496] sm:$0xff]
    %v1498 = vld [vmem:[%s1496 + $0x8] sm:$0xff]
    %v1499 = vld [vmem:[%s1496 + $0x10] sm:$0xff]
    %v1500 = vld [vmem:[%s1496 + $0x18] sm:$0xff]
    %v1501 = vrot.slane %v1434, 2
    %v1502 = vrot.slane %v1435, 1
    %v1503 = vsel %vm1448, %v1502, %v1501
    %v1504 = vsel %vm187, %v1503, 0
    %1506 = vmatpush.msra.mxu0 0.0
    %1507 = vmatpush.msra.mxu0 0.0
    %1508 = vmatpush.msra.mxu0 0.0
    %1509 = vmatpush.msra.mxu0 0.0
    %1510 = vmatpush.msra.mxu0 0.0
    %1511 = vmatpush.msra.mxu0 0.0
    %1512 = vmatpush.msra.mxu0 0.0
    %1513 = vmatpush.msra.mxu0 0.0
    %1514 = vmatpush.msra.mxu0 0.0
    %1515 = vmatpush.msra.mxu0 0.0
    %1516 = vmatpush.msra.mxu0 0.0
    %1517 = vmatpush.msra.mxu0 0.0
    %1518 = vmatpush.msra.mxu0 %v1500
    %1519 = vmatpush.msra.mxu0 %v1499
    %1520 = vmatpush.msra.mxu0 %v1498
    %1521 = vmatpush.msra.mxu0 %v1497
    %1522 = vmatmul.f32.gmra.mxu0 %v1504
    %v1523 = vpop.f32.mrf.mxu0
    %v1524 = vadd.f32 0.0, %v1523
    %1525 = vdwg.mxu0
    %v1526 = vadd.f32 %v1494, %v1524
    %s1527 = scalar_lea.vmem [#allocation11], 96
    %v1528 = vld [vmem:[%s1527] sm:$0xff]
    %v1529 = vld [vmem:[%s1527 + $0x8] sm:$0xff]
    %v1530 = vld [vmem:[%s1527 + $0x10] sm:$0xff]
    %v1531 = vld [vmem:[%s1527 + $0x18] sm:$0xff]
    %v1532 = vrot.slane %v1434, 3
    %v1533 = vrot.slane %v1435, 2
    %v1534 = vsel %vm1448, %v1533, %v1532
    %v1535 = vsel %vm187, %v1534, 0
    %1537 = vmatpush.msra.mxu0 0.0
    %1538 = vmatpush.msra.mxu0 0.0
    %1539 = vmatpush.msra.mxu0 0.0
    %1540 = vmatpush.msra.mxu0 0.0
    %1541 = vmatpush.msra.mxu0 0.0
    %1542 = vmatpush.msra.mxu0 0.0
    %1543 = vmatpush.msra.mxu0 0.0
    %1544 = vmatpush.msra.mxu0 0.0
    %1545 = vmatpush.msra.mxu0 0.0
    %1546 = vmatpush.msra.mxu0 0.0
    %1547 = vmatpush.msra.mxu0 0.0
    %1548 = vmatpush.msra.mxu0 0.0
    %1549 = vmatpush.msra.mxu0 %v1531
    %1550 = vmatpush.msra.mxu0 %v1530
    %1551 = vmatpush.msra.mxu0 %v1529
    %1552 = vmatpush.msra.mxu0 %v1528
    %1553 = vmatmul.f32.gmra.mxu0 %v1535
    %v1554 = vpop.f32.mrf.mxu0
    %v1555 = vadd.f32 0.0, %v1554
    %1556 = vdwg.mxu0
    %v1557 = vadd.f32 %v1526, %v1555
    %s1558 = scalar_lea.vmem [#allocation11], 128
    %v1559 = vld [vmem:[%s1558] sm:$0xff]
    %v1560 = vld [vmem:[%s1558 + $0x8] sm:$0xff]
    %v1561 = vld [vmem:[%s1558 + $0x10] sm:$0xff]
    %v1562 = vld [vmem:[%s1558 + $0x18] sm:$0xff]
    %v1563 = vrot.slane %v1434, 4
    %v1564 = vrot.slane %v1435, 3
    %v1565 = vsel %vm1448, %v1564, %v1563
    %v1566 = vsel %vm187, %v1565, 0
    %1568 = vmatpush.msra.mxu0 0.0
    %1569 = vmatpush.msra.mxu0 0.0
    %1570 = vmatpush.msra.mxu0 0.0
    %1571 = vmatpush.msra.mxu0 0.0
    %1572 = vmatpush.msra.mxu0 0.0
    %1573 = vmatpush.msra.mxu0 0.0
    %1574 = vmatpush.msra.mxu0 0.0
    %1575 = vmatpush.msra.mxu0 0.0
    %1576 = vmatpush.msra.mxu0 0.0
    %1577 = vmatpush.msra.mxu0 0.0
    %1578 = vmatpush.msra.mxu0 0.0
    %1579 = vmatpush.msra.mxu0 0.0
    %1580 = vmatpush.msra.mxu0 %v1562
    %1581 = vmatpush.msra.mxu0 %v1561
    %1582 = vmatpush.msra.mxu0 %v1560
    %1583 = vmatpush.msra.mxu0 %v1559
    %1584 = vmatmul.f32.gmra.mxu0 %v1566
    %v1585 = vpop.f32.mrf.mxu0
    %v1586 = vadd.f32 0.0, %v1585
    %1587 = vdwg.mxu0
    %v1588 = vadd.f32 %v1557, %v1586
    %s1589 = scalar_lea.vmem [#allocation11], 160
    %v1590 = vld [vmem:[%s1589] sm:$0xff]
    %v1591 = vld [vmem:[%s1589 + $0x8] sm:$0xff]
    %v1592 = vld [vmem:[%s1589 + $0x10] sm:$0xff]
    %v1593 = vld [vmem:[%s1589 + $0x18] sm:$0xff]
    %v1594 = vrot.slane %v1434, 5
    %v1595 = vrot.slane %v1435, 4
    %v1596 = vsel %vm1448, %v1595, %v1594
    %v1597 = vsel %vm187, %v1596, 0
    %1599 = vmatpush.msra.mxu0 0.0
    %1600 = vmatpush.msra.mxu0 0.0
    %1601 = vmatpush.msra.mxu0 0.0
    %1602 = vmatpush.msra.mxu0 0.0
    %1603 = vmatpush.msra.mxu0 0.0
    %1604 = vmatpush.msra.mxu0 0.0
    %1605 = vmatpush.msra.mxu0 0.0
    %1606 = vmatpush.msra.mxu0 0.0
    %1607 = vmatpush.msra.mxu0 0.0
    %1608 = vmatpush.msra.mxu0 0.0
    %1609 = vmatpush.msra.mxu0 0.0
    %1610 = vmatpush.msra.mxu0 0.0
    %1611 = vmatpush.msra.mxu0 %v1593
    %1612 = vmatpush.msra.mxu0 %v1592
    %1613 = vmatpush.msra.mxu0 %v1591
    %1614 = vmatpush.msra.mxu0 %v1590
    %1615 = vmatmul.f32.gmra.mxu0 %v1597
    %v1616 = vpop.f32.mrf.mxu0
    %v1617 = vadd.f32 0.0, %v1616
    %1618 = vdwg.mxu0
    %v1619 = vadd.f32 %v1588, %v1617
    %s1620 = scalar_lea.vmem [#allocation11], 192
    %v1621 = vld [vmem:[%s1620] sm:$0xff]
    %v1622 = vld [vmem:[%s1620 + $0x8] sm:$0xff]
    %v1623 = vld [vmem:[%s1620 + $0x10] sm:$0xff]
    %v1624 = vld [vmem:[%s1620 + $0x18] sm:$0xff]
    %v1625 = vrot.slane %v1434, 6
    %v1626 = vrot.slane %v1435, 5
    %v1627 = vsel %vm1448, %v1626, %v1625
    %v1628 = vsel %vm187, %v1627, 0
    %1630 = vmatpush.msra.mxu0 0.0
    %1631 = vmatpush.msra.mxu0 0.0
    %1632 = vmatpush.msra.mxu0 0.0
    %1633 = vmatpush.msra.mxu0 0.0
    %1634 = vmatpush.msra.mxu0 0.0
    %1635 = vmatpush.msra.mxu0 0.0
    %1636 = vmatpush.msra.mxu0 0.0
    %1637 = vmatpush.msra.mxu0 0.0
    %1638 = vmatpush.msra.mxu0 0.0
    %1639 = vmatpush.msra.mxu0 0.0
    %1640 = vmatpush.msra.mxu0 0.0
    %1641 = vmatpush.msra.mxu0 0.0
    %1642 = vmatpush.msra.mxu0 %v1624
    %1643 = vmatpush.msra.mxu0 %v1623
    %1644 = vmatpush.msra.mxu0 %v1622
    %1645 = vmatpush.msra.mxu0 %v1621
    %1646 = vmatmul.f32.gmra.mxu0 %v1628
    %v1647 = vpop.f32.mrf.mxu0
    %v1648 = vadd.f32 0.0, %v1647
    %1649 = vdwg.mxu0
    %v1650 = vadd.f32 %v1619, %v1648
    %s1651 = scalar_lea.vmem [#allocation11], 224
    %v1652 = vld [vmem:[%s1651] sm:$0xff]
    %v1653 = vld [vmem:[%s1651 + $0x8] sm:$0xff]
    %v1654 = vld [vmem:[%s1651 + $0x10] sm:$0xff]
    %v1655 = vld [vmem:[%s1651 + $0x18] sm:$0xff]
    %v1656 = vrot.slane %v1434, 7
    %v1657 = vrot.slane %v1435, 6
    %v1658 = vsel %vm1448, %v1657, %v1656
    %v1659 = vsel %vm187, %v1658, 0
    %1661 = vmatpush.msra.mxu0 0.0
    %1662 = vmatpush.msra.mxu0 0.0
    %1663 = vmatpush.msra.mxu0 0.0
    %1664 = vmatpush.msra.mxu0 0.0
    %1665 = vmatpush.msra.mxu0 0.0
    %1666 = vmatpush.msra.mxu0 0.0
    %1667 = vmatpush.msra.mxu0 0.0
    %1668 = vmatpush.msra.mxu0 0.0
    %1669 = vmatpush.msra.mxu0 0.0
    %1670 = vmatpush.msra.mxu0 0.0
    %1671 = vmatpush.msra.mxu0 0.0
    %1672 = vmatpush.msra.mxu0 0.0
    %1673 = vmatpush.msra.mxu0 %v1655
    %1674 = vmatpush.msra.mxu0 %v1654
    %1675 = vmatpush.msra.mxu0 %v1653
    %1676 = vmatpush.msra.mxu0 %v1652
    %1677 = vmatmul.f32.gmra.mxu0 %v1659
    %v1678 = vpop.f32.mrf.mxu0
    %v1679 = vadd.f32 0.0, %v1678
    %1680 = vdwg.mxu0
    %v1681 = vadd.f32 %v1650, %v1679
    %v1682 = vld [vmem:[%s14] sm:$0x1]
    %v1684 = vperm.slane %v1682, 0
    %v1686 = vadd.f32 %v1681, %v1684
    %v1687 = vmax.f32 %v1686, 0.0
    %v1688 = vld [vmem:[%s15] sm:$0x1]
    %v1690 = vperm.slane %v1688, 0
    %v1692 = vmul.f32 %v1687, %v1690
    %vm1693 = vcmask 254976
    %v1694 = vsel %vm1693, %v1692, 0.0
    %1695 = vadd.xlane.f32.xlu0 %v1694
    %v1696 = vpop.xlane.xlu0 %1695
    %v1697 = vld [vmem:[#allocation2] sm:$0x1]
    %v1699 = vperm.slane %v1697, 0
    %v1701 = vadd.f32 %v1696, %v1699
    %vm1702 = vcmp.gt.f32.partialorder %v1701, 20.0
    %v1703 = vmin.f32 %v1701, 20.0
    %v1704 = vmul.f32 %v1703, 1.442695
    %v1705 = vpow.pop %v1704
    %v1706 = vadd.f32 %v1705, 1.0
    %v1707 = vlog2.pop %v1706
    %v1708 = vmul.f32 %v1707, 0.6931472
    %v1709 = vmul.f32 -0.5, %v1705
    %v1710 = vadd.f32 %v1709, 1.0
    %v1711 = vmul.f32 %v1710, %v1705
    %v1712 = vand.u32 2147483647, %v1705
    %vm1713 = vcmp.lt.f32.partialorder %v1712, 0.0004427343
    %v1714 = vsel %vm1713, %v1711, %v1708
    %v1715 = vsel %vm1702, %v1701, %v1714
    %vm1716 = vcmask 1024
    %1717 = vst.msk [vmem:[%s17] sm:$0x3] %vm1716, %v1715
    // Predicated region
    $region90: #{tpu_custom_call.1} parent=1 // pred_check
      _
    $region91: #{tpu_custom_call.1} parent=1 // pred_check_branch
      %1719 = sbr.rel (0) target = $region93
    $region92: #{tpu_custom_call.1} parent=1 // pred_region
      _
    $region93: #{tpu_custom_call.1} parent=1 // pred_fallthru
      _
    // Predicated region
    $region94: #{tpu_custom_call.1} parent=1 // pred_check
      _
    $region95: #{tpu_custom_call.1} parent=1 // pred_check_branch
      %1721 = sbr.rel (0) target = $region97
    $region96: #{tpu_custom_call.1} parent=1 // pred_region
      %1723 = vsyncadd [#allocation5], 0
      %s1724 = sshll.u32 [#allocation12], 4
      %s1725 = int_to_ptr.vmem [resolvable:$true] %s1724
      %s1726 = sshll.u32 %s18, 4
      %s1727 = int_to_ptr.hbm [resolvable:$true] %s1726
      %1732 = dma.vmem_to_hbm [thread:$0]  %s1725, 768, %s1727, [#allocation5], 128, 128, 8
    $region97: #{tpu_custom_call.1} parent=1 // pred_fallthru
      _
    // Predicated region
    $region98: #{tpu_custom_call.1} parent=1 // pred_check
      _
    $region99: #{tpu_custom_call.1} parent=1 // pred_check_branch
      %1734 = sbr.rel (0) target = $region101
    $region100: #{tpu_custom_call.1} parent=1 // pred_region
      _
    $region101: #{tpu_custom_call.1} parent=1 // pred_fallthru
      _
    // Predicated region
    $region102: #{tpu_custom_call.1} parent=1 // pred_check
      _
    $region103: #{tpu_custom_call.1} parent=1 // pred_check_branch
      %1736 = sbr.rel (0) target = $region105
    $region104: #{tpu_custom_call.1} parent=1 // pred_region
      %1738 = dma.done [#allocation5], 768
    $region105: #{tpu_custom_call.1} parent=1 // pred_fallthru
      _
    %1739 = vsyncpa [#allocation4], 1
    %1740 = vsyncpa [#allocation7], 1
    %1741 = vsyncpa [#allocation10], 1
    %1742 = vsyncpa [#allocation5], 1

</llo_original>
